<compile_context>
chip_gen: v7x
topology: tpu7x:2x2x1
jax: 0.10.0
libtpu: 0.0.40
codegen_flags: <defaults>
</compile_context>

<pallas_src>
import functools

import jax
import jax.numpy as jnp
from jax import lax
from jax.experimental import pallas as pl
from jax.experimental.pallas import tpu as pltpu


def _round_up(x, m):
    return (x + m - 1) // m * m


def _isic_fused_kernel(x_ref, wconv_ref, bconv_ref, whead_ref, bhead_ref, out_ref,
                       *, H, W, Wp, cin, cout, chunk_rows, inv_hw):
    """One batch element: 3x3 conv stem -> ReLU -> global-avg-pool -> linear head.

    x_ref:     (cin, Lpad) bf16 — flattened zero-padded image, lane-dense.
    wconv_ref: (cout, 9*cin) f32 — column (kh*3+kw)*cin + ci.
    bconv_ref: (cout, 1) f32; whead_ref: (cout, 1) f32; bhead_ref: (1, 1) f32.
    out_ref:   (1, 1) f32.
    """
    wcols = wconv_ref[...]                 # (cout, 27) resident in vregs
    bconv = bconv_ref[...]                 # (cout, 1)

    def col_mask(m_c):
        # valid-column mask for the over-complete (row-stride Wp) flat output
        col = lax.broadcasted_iota(jnp.int32, (1, m_c), 1) % Wp
        return (col < W).astype(jnp.float32)

    pooled = jnp.zeros((cout, 1), jnp.float32)
    masks = {}

    # Statically unrolled chunk loop over output rows: keeps the per-chunk
    # accumulator to a handful of vregs and folds into `pooled` immediately.
    # TODO(synk): for very large H switch this to a lax.fori_loop with pl.ds.
    h0 = 0
    while h0 < H:
        ch = min(chunk_rows, H - h0)
        m_c = ch * Wp
        if ch not in masks:
            masks[ch] = col_mask(m_c)
        mask = masks[ch]

        lw = (ch + 2) * Wp + 2             # halo'd window length for this chunk
        acc = jnp.zeros((cout, m_c), jnp.float32)
        for ci in range(cin):
            # One narrow bf16->f32 cast per (chunk, channel) window; taps below
            # are in-register shifted slices of this window.
            win = x_ref[ci:ci + 1, h0 * Wp: h0 * Wp + lw].astype(jnp.float32)
            for kh in range(3):
                for kw in range(3):
                    idx = (kh * 3 + kw) * cin + ci
                    xs = win[:, kh * Wp + kw: kh * Wp + kw + m_c]   # (1, m_c)
                    acc = acc + wcols[:, idx:idx + 1] * xs          # VPU FMA
        hact = jnp.maximum(acc + bconv, 0.0)                        # bias + ReLU
        pooled = pooled + jnp.sum(hact * mask, axis=1, keepdims=True)
        h0 += ch

    pooled = pooled * jnp.float32(inv_hw)                           # GAP mean
    # num_classes == 1 head: VPU multiply + sublane reduce.
    logit = jnp.sum(pooled * whead_ref[...], axis=0, keepdims=True)  # (1, 1)
    out_ref[...] = logit + bhead_ref[...]


def isic_forward(x_nchw, params, *, chunk_rows=None):
    """Forward pass. x_nchw: (B, Cin, H, W) float32. Returns (B, 1) float32."""
    wconv, bconv, whead, bhead = params      # (9,Cin,Cout),(1,Cout),(1,Cout),(1,1)
    assert wconv.shape[0] == 9, "3x3 conv stem expected"
    B, cin, H, W = x_nchw.shape
    cout = wconv.shape[-1]
    Hp, Wp = H + 2, W + 2
    Lp = Hp * Wp
    Lpad = _round_up(Lp + 2, 128)            # lane-dense flat length (+2 slack for
                                             # over-complete tap reads at the edge)
    if chunk_rows is None:
        chunk_rows = max(1, min(H, 1024 // Wp))

    # Single 'same' zero-pad + channels-major spatial flatten (one cheap HBM pass,
    # no duplicated halo copies); bf16 halves the streamed DMA traffic.
    xp = jnp.pad(x_nchw.astype(jnp.bfloat16), ((0, 0), (0, 0), (1, 1), (1, 1)))
    xf = xp.reshape(B, cin, Lp)
    xf = jnp.pad(xf, ((0, 0), (0, 0), (0, Lpad - Lp)))               # (B, cin, Lpad)

    # Weight packing: (cout, 9*cin), column index (kh*3+kw)*cin + ci.
    wpack = wconv.reshape(9 * cin, cout).T.astype(jnp.float32)       # (cout, 27)
    bcol = bconv.reshape(cout, 1).astype(jnp.float32)
    wh = whead.reshape(cout, 1).astype(jnp.float32)
    bh = bhead.reshape(1, 1).astype(jnp.float32)

    kernel = functools.partial(
        _isic_fused_kernel, H=H, W=W, Wp=Wp, cin=cin, cout=cout,
        chunk_rows=chunk_rows, inv_hw=1.0 / (H * W))

    flops = int(2 * B * H * W * 9 * cin * cout)
    bytes_accessed = int(xf.size * 2 + wpack.size * 4 + (2 * cout + 1) * 4 + B * 4)

    out = pl.pallas_call(
        kernel,
        out_shape=jax.ShapeDtypeStruct((B, 1, 1), jnp.float32),
        grid=(B,),
        in_specs=[
            pl.BlockSpec((None, cin, Lpad), lambda b: (b, 0, 0)),
            pl.BlockSpec((cout, 9 * cin), lambda b: (0, 0)),
            pl.BlockSpec((cout, 1), lambda b: (0, 0)),
            pl.BlockSpec((cout, 1), lambda b: (0, 0)),
            pl.BlockSpec((1, 1), lambda b: (0, 0)),
        ],
        out_specs=pl.BlockSpec((None, 1, 1), lambda b: (b, 0, 0)),
        compiler_params=pltpu.CompilerParams(
            dimension_semantics=("parallel",),
            vmem_limit_bytes=48 * 1024 * 1024),
        cost_estimate=pl.CostEstimate(flops=flops, transcendentals=0,
                                      bytes_accessed=bytes_accessed),
    )(xf, wpack, bcol, wh, bh)
    return out.reshape(B, 1)


def isic_forward_reference(x_nchw, params):
    """Pure-JAX reference (same bf16 input rounding, f32 math)."""
    wconv, bconv, whead, bhead = params
    B, cin, H, W = x_nchw.shape
    x = x_nchw.astype(jnp.bfloat16).astype(jnp.float32)
    xp = jnp.pad(x, ((0, 0), (0, 0), (1, 1), (1, 1)))
    h = jnp.zeros((B, wconv.shape[-1], H, W), jnp.float32)
    for kh in range(3):
        for kw in range(3):
            tap = xp[:, :, kh:kh + H, kw:kw + W]                     # (B,cin,H,W)
            h = h + jnp.einsum("bchw,cd->bdhw", tap, wconv[kh * 3 + kw],
                               precision=lax.Precision.HIGHEST)
    h = jnp.maximum(h + bconv[0][None, :, None, None], 0.0)
    pooled = jnp.mean(h, axis=(2, 3))                                # (B, cout)
    return jnp.einsum("bc,nc->bn", pooled, whead,
                      precision=lax.Precision.HIGHEST) + bhead


def init_params(key, cin=3, cout=32, num_classes=1):
    k1, k2, k3, k4 = jax.random.split(key, 4)
    wconv = jax.random.normal(k1, (9, cin, cout), jnp.float32) * 0.1
    bconv = jax.random.normal(k2, (1, cout), jnp.float32) * 0.01
    whead = jax.random.normal(k3, (num_classes, cout), jnp.float32) * 0.1
    bhead = jax.random.normal(k4, (1, num_classes), jnp.float32) * 0.01
    return wconv, bconv, whead, bhead


if __name__ == "__main__":
    key = jax.random.PRNGKey(0)
    kx, kp = jax.random.split(key)

    B, Cin, H, W = 2, 3, 16, 16
    x = jax.random.normal(kx, (B, Cin, H, W), jnp.float32)
    params = init_params(kp, cin=Cin, cout=32, num_classes=1)

    fwd = jax.jit(isic_forward)
    out = jax.block_until_ready(fwd(x, params))
    ref = jax.block_until_ready(isic_forward_reference(x, params))

    assert out.shape == (B, 1) and out.dtype == jnp.float32
    max_err = float(jnp.max(jnp.abs(out - ref)))
    assert max_err < 1e-3, f"mismatch vs reference: {max_err}"
    print("KERNEL_OK")
</pallas_src>

<mosaic_0001>
module attributes {stable_mosaic.version = 11 : i64} {
  func.func @_isic_fused_kernel(%arg0: i32, %arg1: memref<1x3x384xbf16, #tpu.memory_space<vmem>>, %arg2: memref<32x27xf32, #tpu.memory_space<vmem>>, %arg3: memref<32x1xf32, #tpu.memory_space<vmem>>, %arg4: memref<32x1xf32, #tpu.memory_space<vmem>>, %arg5: memref<1x1xf32, #tpu.memory_space<vmem>>, %arg6: memref<1x1x1xf32, #tpu.memory_space<vmem>>) attributes {dimension_semantics = [#tpu.dimension_semantics<parallel>], iteration_bounds = array<i64: 2>, scalar_prefetch = 0 : i64, scratch_operands = 0 : i64, tpu.core_type = #tpu.core_type<tc>, window_params = [{transform_indices = @transform_0, window_bounds = array<i64: 1, 3, 384>}, {pipeline_mode = #tpu.pipeline_mode<synchronous>, transform_indices = @transform_1, window_bounds = array<i64: 32, 27>}, {pipeline_mode = #tpu.pipeline_mode<synchronous>, transform_indices = @transform_2, window_bounds = array<i64: 32, 1>}, {pipeline_mode = #tpu.pipeline_mode<synchronous>, transform_indices = @transform_3, window_bounds = array<i64: 32, 1>}, {pipeline_mode = #tpu.pipeline_mode<synchronous>, transform_indices = @transform_4, window_bounds = array<i64: 1, 1>}, {transform_indices = @transform_5, window_bounds = array<i64: 1, 1, 1>}]} {
    %c0 = arith.constant 0 : index
    %c0_0 = arith.constant 0 : index
    %0 = vector.load %arg2[%c0, %c0_0] : memref<32x27xf32, #tpu.memory_space<vmem>>, vector<32x27xf32>
    %c0_1 = arith.constant 0 : index
    %c0_2 = arith.constant 0 : index
    %1 = vector.load %arg3[%c0_1, %c0_2] : memref<32x1xf32, #tpu.memory_space<vmem>>, vector<32x1xf32>
    %cst = arith.constant 0.000000e+00 : f32
    %2 = vector.broadcast %cst : f32 to vector<32x1xf32>
    %3 = tpu.iota {dimensions = array<i32: 1>} : vector<1x288xi32>
    %c18_i32 = arith.constant 18 : i32
    %c0_i32 = arith.constant 0 : i32
    %4 = arith.cmpi eq, %c18_i32, %c0_i32 : i32
    %c1_i32 = arith.constant 1 : i32
    %5 = arith.select %4, %c1_i32, %c18_i32 : i32
    %6 = vector.broadcast %5 : i32 to vector<1x288xi32>
    %7 = arith.remsi %3, %6 : vector<1x288xi32>
    %c0_i32_3 = arith.constant 0 : i32
    %8 = vector.broadcast %c0_i32_3 : i32 to vector<1x288xi32>
    %9 = arith.cmpi ne, %7, %8 : vector<1x288xi32>
    %c0_i32_4 = arith.constant 0 : i32
    %10 = vector.broadcast %c0_i32_4 : i32 to vector<1x288xi32>
    %11 = arith.cmpi slt, %7, %10 : vector<1x288xi32>
    %c0_i32_5 = arith.constant 0 : i32
    %12 = arith.cmpi slt, %5, %c0_i32_5 : i32
    %13 = vector.broadcast %12 : i1 to vector<1x288xi1>
    %14 = vector.broadcast %13 : vector<1x288xi1> to vector<1x288xi1>
    %15 = arith.xori %11, %14 : vector<1x288xi1>
    %16 = arith.andi %15, %9 : vector<1x288xi1>
    %17 = vector.broadcast %5 : i32 to vector<1x288xi32>
    %18 = arith.addi %7, %17 : vector<1x288xi32>
    %19 = arith.select %16, %18, %7 : vector<1x288xi1>, vector<1x288xi32>
    %c16_i32 = arith.constant 16 : i32
    %20 = vector.broadcast %c16_i32 : i32 to vector<1x288xi32>
    %21 = arith.cmpi slt, %19, %20 : vector<1x288xi32>
    %22 = arith.extui %21 : vector<1x288xi1> to vector<1x288xi32>
    %23 = arith.sitofp %22 : vector<1x288xi32> to vector<1x288xf32>
    %cst_6 = arith.constant 0.000000e+00 : f32
    %24 = vector.broadcast %cst_6 : f32 to vector<32x288xf32>
    %c0_7 = arith.constant 0 : index
    %c0_8 = arith.constant 0 : index
    %c0_9 = arith.constant 0 : index
    %25 = vector.load %arg1[%c0_7, %c0_8, %c0_9] : memref<1x3x384xbf16, #tpu.memory_space<vmem>>, vector<1x1x326xbf16>
    %26 = vector.shape_cast %25 : vector<1x1x326xbf16> to vector<1x326xbf16>
    %27 = arith.extf %26 : vector<1x326xbf16> to vector<1x326xf32>
    %28 = vector.extract_strided_slice %27 {offsets = [0, 0], sizes = [1, 288], strides = [1, 1]} : vector<1x326xf32> to vector<1x288xf32>
    %29 = vector.extract_strided_slice %0 {offsets = [0, 0], sizes = [32, 1], strides = [1, 1]} : vector<32x27xf32> to vector<32x1xf32>
    %30 = vector.broadcast %29 : vector<32x1xf32> to vector<32x288xf32>
    %31 = vector.broadcast %28 : vector<1x288xf32> to vector<32x288xf32>
    %32 = arith.mulf %30, %31 : vector<32x288xf32>
    %33 = arith.addf %24, %32 : vector<32x288xf32>
    %34 = vector.extract_strided_slice %27 {offsets = [0, 1], sizes = [1, 288], strides = [1, 1]} : vector<1x326xf32> to vector<1x288xf32>
    %35 = vector.extract_strided_slice %0 {offsets = [0, 3], sizes = [32, 1], strides = [1, 1]} : vector<32x27xf32> to vector<32x1xf32>
    %36 = vector.broadcast %35 : vector<32x1xf32> to vector<32x288xf32>
    %37 = vector.broadcast %34 : vector<1x288xf32> to vector<32x288xf32>
    %38 = arith.mulf %36, %37 : vector<32x288xf32>
    %39 = arith.addf %33, %38 : vector<32x288xf32>
    %40 = vector.extract_strided_slice %27 {offsets = [0, 2], sizes = [1, 288], strides = [1, 1]} : vector<1x326xf32> to vector<1x288xf32>
    %41 = vector.extract_strided_slice %0 {offsets = [0, 6], sizes = [32, 1], strides = [1, 1]} : vector<32x27xf32> to vector<32x1xf32>
    %42 = vector.broadcast %41 : vector<32x1xf32> to vector<32x288xf32>
    %43 = vector.broadcast %40 : vector<1x288xf32> to vector<32x288xf32>
    %44 = arith.mulf %42, %43 : vector<32x288xf32>
    %45 = arith.addf %39, %44 : vector<32x288xf32>
    %46 = vector.extract_strided_slice %27 {offsets = [0, 18], sizes = [1, 288], strides = [1, 1]} : vector<1x326xf32> to vector<1x288xf32>
    %47 = vector.extract_strided_slice %0 {offsets = [0, 9], sizes = [32, 1], strides = [1, 1]} : vector<32x27xf32> to vector<32x1xf32>
    %48 = vector.broadcast %47 : vector<32x1xf32> to vector<32x288xf32>
    %49 = vector.broadcast %46 : vector<1x288xf32> to vector<32x288xf32>
    %50 = arith.mulf %48, %49 : vector<32x288xf32>
    %51 = arith.addf %45, %50 : vector<32x288xf32>
    %52 = vector.extract_strided_slice %27 {offsets = [0, 19], sizes = [1, 288], strides = [1, 1]} : vector<1x326xf32> to vector<1x288xf32>
    %53 = vector.extract_strided_slice %0 {offsets = [0, 12], sizes = [32, 1], strides = [1, 1]} : vector<32x27xf32> to vector<32x1xf32>
    %54 = vector.broadcast %53 : vector<32x1xf32> to vector<32x288xf32>
    %55 = vector.broadcast %52 : vector<1x288xf32> to vector<32x288xf32>
    %56 = arith.mulf %54, %55 : vector<32x288xf32>
    %57 = arith.addf %51, %56 : vector<32x288xf32>
    %58 = vector.extract_strided_slice %27 {offsets = [0, 20], sizes = [1, 288], strides = [1, 1]} : vector<1x326xf32> to vector<1x288xf32>
    %59 = vector.extract_strided_slice %0 {offsets = [0, 15], sizes = [32, 1], strides = [1, 1]} : vector<32x27xf32> to vector<32x1xf32>
    %60 = vector.broadcast %59 : vector<32x1xf32> to vector<32x288xf32>
    %61 = vector.broadcast %58 : vector<1x288xf32> to vector<32x288xf32>
    %62 = arith.mulf %60, %61 : vector<32x288xf32>
    %63 = arith.addf %57, %62 : vector<32x288xf32>
    %64 = vector.extract_strided_slice %27 {offsets = [0, 36], sizes = [1, 288], strides = [1, 1]} : vector<1x326xf32> to vector<1x288xf32>
    %65 = vector.extract_strided_slice %0 {offsets = [0, 18], sizes = [32, 1], strides = [1, 1]} : vector<32x27xf32> to vector<32x1xf32>
    %66 = vector.broadcast %65 : vector<32x1xf32> to vector<32x288xf32>
    %67 = vector.broadcast %64 : vector<1x288xf32> to vector<32x288xf32>
    %68 = arith.mulf %66, %67 : vector<32x288xf32>
    %69 = arith.addf %63, %68 : vector<32x288xf32>
    %70 = vector.extract_strided_slice %27 {offsets = [0, 37], sizes = [1, 288], strides = [1, 1]} : vector<1x326xf32> to vector<1x288xf32>
    %71 = vector.extract_strided_slice %0 {offsets = [0, 21], sizes = [32, 1], strides = [1, 1]} : vector<32x27xf32> to vector<32x1xf32>
    %72 = vector.broadcast %71 : vector<32x1xf32> to vector<32x288xf32>
    %73 = vector.broadcast %70 : vector<1x288xf32> to vector<32x288xf32>
    %74 = arith.mulf %72, %73 : vector<32x288xf32>
    %75 = arith.addf %69, %74 : vector<32x288xf32>
    %76 = vector.extract_strided_slice %27 {offsets = [0, 38], sizes = [1, 288], strides = [1, 1]} : vector<1x326xf32> to vector<1x288xf32>
    %77 = vector.extract_strided_slice %0 {offsets = [0, 24], sizes = [32, 1], strides = [1, 1]} : vector<32x27xf32> to vector<32x1xf32>
    %78 = vector.broadcast %77 : vector<32x1xf32> to vector<32x288xf32>
    %79 = vector.broadcast %76 : vector<1x288xf32> to vector<32x288xf32>
    %80 = arith.mulf %78, %79 : vector<32x288xf32>
    %81 = arith.addf %75, %80 : vector<32x288xf32>
    %c0_10 = arith.constant 0 : index
    %c1 = arith.constant 1 : index
    %c0_11 = arith.constant 0 : index
    %82 = vector.load %arg1[%c0_10, %c1, %c0_11] : memref<1x3x384xbf16, #tpu.memory_space<vmem>>, vector<1x1x326xbf16>
    %83 = vector.shape_cast %82 : vector<1x1x326xbf16> to vector<1x326xbf16>
    %84 = arith.extf %83 : vector<1x326xbf16> to vector<1x326xf32>
    %85 = vector.extract_strided_slice %84 {offsets = [0, 0], sizes = [1, 288], strides = [1, 1]} : vector<1x326xf32> to vector<1x288xf32>
    %86 = vector.extract_strided_slice %0 {offsets = [0, 1], sizes = [32, 1], strides = [1, 1]} : vector<32x27xf32> to vector<32x1xf32>
    %87 = vector.broadcast %86 : vector<32x1xf32> to vector<32x288xf32>
    %88 = vector.broadcast %85 : vector<1x288xf32> to vector<32x288xf32>
    %89 = arith.mulf %87, %88 : vector<32x288xf32>
    %90 = arith.addf %81, %89 : vector<32x288xf32>
    %91 = vector.extract_strided_slice %84 {offsets = [0, 1], sizes = [1, 288], strides = [1, 1]} : vector<1x326xf32> to vector<1x288xf32>
    %92 = vector.extract_strided_slice %0 {offsets = [0, 4], sizes = [32, 1], strides = [1, 1]} : vector<32x27xf32> to vector<32x1xf32>
    %93 = vector.broadcast %92 : vector<32x1xf32> to vector<32x288xf32>
    %94 = vector.broadcast %91 : vector<1x288xf32> to vector<32x288xf32>
    %95 = arith.mulf %93, %94 : vector<32x288xf32>
    %96 = arith.addf %90, %95 : vector<32x288xf32>
    %97 = vector.extract_strided_slice %84 {offsets = [0, 2], sizes = [1, 288], strides = [1, 1]} : vector<1x326xf32> to vector<1x288xf32>
    %98 = vector.extract_strided_slice %0 {offsets = [0, 7], sizes = [32, 1], strides = [1, 1]} : vector<32x27xf32> to vector<32x1xf32>
    %99 = vector.broadcast %98 : vector<32x1xf32> to vector<32x288xf32>
    %100 = vector.broadcast %97 : vector<1x288xf32> to vector<32x288xf32>
    %101 = arith.mulf %99, %100 : vector<32x288xf32>
    %102 = arith.addf %96, %101 : vector<32x288xf32>
    %103 = vector.extract_strided_slice %84 {offsets = [0, 18], sizes = [1, 288], strides = [1, 1]} : vector<1x326xf32> to vector<1x288xf32>
    %104 = vector.extract_strided_slice %0 {offsets = [0, 10], sizes = [32, 1], strides = [1, 1]} : vector<32x27xf32> to vector<32x1xf32>
    %105 = vector.broadcast %104 : vector<32x1xf32> to vector<32x288xf32>
    %106 = vector.broadcast %103 : vector<1x288xf32> to vector<32x288xf32>
    %107 = arith.mulf %105, %106 : vector<32x288xf32>
    %108 = arith.addf %102, %107 : vector<32x288xf32>
    %109 = vector.extract_strided_slice %84 {offsets = [0, 19], sizes = [1, 288], strides = [1, 1]} : vector<1x326xf32> to vector<1x288xf32>
    %110 = vector.extract_strided_slice %0 {offsets = [0, 13], sizes = [32, 1], strides = [1, 1]} : vector<32x27xf32> to vector<32x1xf32>
    %111 = vector.broadcast %110 : vector<32x1xf32> to vector<32x288xf32>
    %112 = vector.broadcast %109 : vector<1x288xf32> to vector<32x288xf32>
    %113 = arith.mulf %111, %112 : vector<32x288xf32>
    %114 = arith.addf %108, %113 : vector<32x288xf32>
    %115 = vector.extract_strided_slice %84 {offsets = [0, 20], sizes = [1, 288], strides = [1, 1]} : vector<1x326xf32> to vector<1x288xf32>
    %116 = vector.extract_strided_slice %0 {offsets = [0, 16], sizes = [32, 1], strides = [1, 1]} : vector<32x27xf32> to vector<32x1xf32>
    %117 = vector.broadcast %116 : vector<32x1xf32> to vector<32x288xf32>
    %118 = vector.broadcast %115 : vector<1x288xf32> to vector<32x288xf32>
    %119 = arith.mulf %117, %118 : vector<32x288xf32>
    %120 = arith.addf %114, %119 : vector<32x288xf32>
    %121 = vector.extract_strided_slice %84 {offsets = [0, 36], sizes = [1, 288], strides = [1, 1]} : vector<1x326xf32> to vector<1x288xf32>
    %122 = vector.extract_strided_slice %0 {offsets = [0, 19], sizes = [32, 1], strides = [1, 1]} : vector<32x27xf32> to vector<32x1xf32>
    %123 = vector.broadcast %122 : vector<32x1xf32> to vector<32x288xf32>
    %124 = vector.broadcast %121 : vector<1x288xf32> to vector<32x288xf32>
    %125 = arith.mulf %123, %124 : vector<32x288xf32>
    %126 = arith.addf %120, %125 : vector<32x288xf32>
    %127 = vector.extract_strided_slice %84 {offsets = [0, 37], sizes = [1, 288], strides = [1, 1]} : vector<1x326xf32> to vector<1x288xf32>
    %128 = vector.extract_strided_slice %0 {offsets = [0, 22], sizes = [32, 1], strides = [1, 1]} : vector<32x27xf32> to vector<32x1xf32>
    %129 = vector.broadcast %128 : vector<32x1xf32> to vector<32x288xf32>
    %130 = vector.broadcast %127 : vector<1x288xf32> to vector<32x288xf32>
    %131 = arith.mulf %129, %130 : vector<32x288xf32>
    %132 = arith.addf %126, %131 : vector<32x288xf32>
    %133 = vector.extract_strided_slice %84 {offsets = [0, 38], sizes = [1, 288], strides = [1, 1]} : vector<1x326xf32> to vector<1x288xf32>
    %134 = vector.extract_strided_slice %0 {offsets = [0, 25], sizes = [32, 1], strides = [1, 1]} : vector<32x27xf32> to vector<32x1xf32>
    %135 = vector.broadcast %134 : vector<32x1xf32> to vector<32x288xf32>
    %136 = vector.broadcast %133 : vector<1x288xf32> to vector<32x288xf32>
    %137 = arith.mulf %135, %136 : vector<32x288xf32>
    %138 = arith.addf %132, %137 : vector<32x288xf32>
    %c0_12 = arith.constant 0 : index
    %c2 = arith.constant 2 : index
    %c0_13 = arith.constant 0 : index
    %139 = vector.load %arg1[%c0_12, %c2, %c0_13] : memref<1x3x384xbf16, #tpu.memory_space<vmem>>, vector<1x1x326xbf16>
    %140 = vector.shape_cast %139 : vector<1x1x326xbf16> to vector<1x326xbf16>
    %141 = arith.extf %140 : vector<1x326xbf16> to vector<1x326xf32>
    %142 = vector.extract_strided_slice %141 {offsets = [0, 0], sizes = [1, 288], strides = [1, 1]} : vector<1x326xf32> to vector<1x288xf32>
    %143 = vector.extract_strided_slice %0 {offsets = [0, 2], sizes = [32, 1], strides = [1, 1]} : vector<32x27xf32> to vector<32x1xf32>
    %144 = vector.broadcast %143 : vector<32x1xf32> to vector<32x288xf32>
    %145 = vector.broadcast %142 : vector<1x288xf32> to vector<32x288xf32>
    %146 = arith.mulf %144, %145 : vector<32x288xf32>
    %147 = arith.addf %138, %146 : vector<32x288xf32>
    %148 = vector.extract_strided_slice %141 {offsets = [0, 1], sizes = [1, 288], strides = [1, 1]} : vector<1x326xf32> to vector<1x288xf32>
    %149 = vector.extract_strided_slice %0 {offsets = [0, 5], sizes = [32, 1], strides = [1, 1]} : vector<32x27xf32> to vector<32x1xf32>
    %150 = vector.broadcast %149 : vector<32x1xf32> to vector<32x288xf32>
    %151 = vector.broadcast %148 : vector<1x288xf32> to vector<32x288xf32>
    %152 = arith.mulf %150, %151 : vector<32x288xf32>
    %153 = arith.addf %147, %152 : vector<32x288xf32>
    %154 = vector.extract_strided_slice %141 {offsets = [0, 2], sizes = [1, 288], strides = [1, 1]} : vector<1x326xf32> to vector<1x288xf32>
    %155 = vector.extract_strided_slice %0 {offsets = [0, 8], sizes = [32, 1], strides = [1, 1]} : vector<32x27xf32> to vector<32x1xf32>
    %156 = vector.broadcast %155 : vector<32x1xf32> to vector<32x288xf32>
    %157 = vector.broadcast %154 : vector<1x288xf32> to vector<32x288xf32>
    %158 = arith.mulf %156, %157 : vector<32x288xf32>
    %159 = arith.addf %153, %158 : vector<32x288xf32>
    %160 = vector.extract_strided_slice %141 {offsets = [0, 18], sizes = [1, 288], strides = [1, 1]} : vector<1x326xf32> to vector<1x288xf32>
    %161 = vector.extract_strided_slice %0 {offsets = [0, 11], sizes = [32, 1], strides = [1, 1]} : vector<32x27xf32> to vector<32x1xf32>
    %162 = vector.broadcast %161 : vector<32x1xf32> to vector<32x288xf32>
    %163 = vector.broadcast %160 : vector<1x288xf32> to vector<32x288xf32>
    %164 = arith.mulf %162, %163 : vector<32x288xf32>
    %165 = arith.addf %159, %164 : vector<32x288xf32>
    %166 = vector.extract_strided_slice %141 {offsets = [0, 19], sizes = [1, 288], strides = [1, 1]} : vector<1x326xf32> to vector<1x288xf32>
    %167 = vector.extract_strided_slice %0 {offsets = [0, 14], sizes = [32, 1], strides = [1, 1]} : vector<32x27xf32> to vector<32x1xf32>
    %168 = vector.broadcast %167 : vector<32x1xf32> to vector<32x288xf32>
    %169 = vector.broadcast %166 : vector<1x288xf32> to vector<32x288xf32>
    %170 = arith.mulf %168, %169 : vector<32x288xf32>
    %171 = arith.addf %165, %170 : vector<32x288xf32>
    %172 = vector.extract_strided_slice %141 {offsets = [0, 20], sizes = [1, 288], strides = [1, 1]} : vector<1x326xf32> to vector<1x288xf32>
    %173 = vector.extract_strided_slice %0 {offsets = [0, 17], sizes = [32, 1], strides = [1, 1]} : vector<32x27xf32> to vector<32x1xf32>
    %174 = vector.broadcast %173 : vector<32x1xf32> to vector<32x288xf32>
    %175 = vector.broadcast %172 : vector<1x288xf32> to vector<32x288xf32>
    %176 = arith.mulf %174, %175 : vector<32x288xf32>
    %177 = arith.addf %171, %176 : vector<32x288xf32>
    %178 = vector.extract_strided_slice %141 {offsets = [0, 36], sizes = [1, 288], strides = [1, 1]} : vector<1x326xf32> to vector<1x288xf32>
    %179 = vector.extract_strided_slice %0 {offsets = [0, 20], sizes = [32, 1], strides = [1, 1]} : vector<32x27xf32> to vector<32x1xf32>
    %180 = vector.broadcast %179 : vector<32x1xf32> to vector<32x288xf32>
    %181 = vector.broadcast %178 : vector<1x288xf32> to vector<32x288xf32>
    %182 = arith.mulf %180, %181 : vector<32x288xf32>
    %183 = arith.addf %177, %182 : vector<32x288xf32>
    %184 = vector.extract_strided_slice %141 {offsets = [0, 37], sizes = [1, 288], strides = [1, 1]} : vector<1x326xf32> to vector<1x288xf32>
    %185 = vector.extract_strided_slice %0 {offsets = [0, 23], sizes = [32, 1], strides = [1, 1]} : vector<32x27xf32> to vector<32x1xf32>
    %186 = vector.broadcast %185 : vector<32x1xf32> to vector<32x288xf32>
    %187 = vector.broadcast %184 : vector<1x288xf32> to vector<32x288xf32>
    %188 = arith.mulf %186, %187 : vector<32x288xf32>
    %189 = arith.addf %183, %188 : vector<32x288xf32>
    %190 = vector.extract_strided_slice %141 {offsets = [0, 38], sizes = [1, 288], strides = [1, 1]} : vector<1x326xf32> to vector<1x288xf32>
    %191 = vector.extract_strided_slice %0 {offsets = [0, 26], sizes = [32, 1], strides = [1, 1]} : vector<32x27xf32> to vector<32x1xf32>
    %192 = vector.broadcast %191 : vector<32x1xf32> to vector<32x288xf32>
    %193 = vector.broadcast %190 : vector<1x288xf32> to vector<32x288xf32>
    %194 = arith.mulf %192, %193 : vector<32x288xf32>
    %195 = arith.addf %189, %194 : vector<32x288xf32>
    %196 = vector.broadcast %1 : vector<32x1xf32> to vector<32x288xf32>
    %197 = arith.addf %195, %196 : vector<32x288xf32>
    %cst_14 = arith.constant 0.000000e+00 : f32
    %198 = vector.broadcast %cst_14 : f32 to vector<32x288xf32>
    %199 = arith.maximumf %197, %198 : vector<32x288xf32>
    %200 = vector.broadcast %23 : vector<1x288xf32> to vector<32x288xf32>
    %201 = arith.mulf %199, %200 : vector<32x288xf32>
    %cst_15 = arith.constant dense<0.000000e+00> : vector<32xf32>
    %202 = vector.multi_reduction <add>, %201, %cst_15 [1] : vector<32x288xf32> to vector<32xf32>
    %203 = vector.shape_cast %202 : vector<32xf32> to vector<32x1xf32>
    %204 = arith.addf %2, %203 : vector<32x1xf32>
    %cst_16 = arith.constant 3.906250e-03 : f32
    %205 = vector.broadcast %cst_16 : f32 to vector<32x1xf32>
    %206 = arith.mulf %204, %205 : vector<32x1xf32>
    %c0_17 = arith.constant 0 : index
    %c0_18 = arith.constant 0 : index
    %207 = vector.load %arg4[%c0_17, %c0_18] : memref<32x1xf32, #tpu.memory_space<vmem>>, vector<32x1xf32>
    %208 = arith.mulf %206, %207 : vector<32x1xf32>
    %cst_19 = arith.constant dense<0.000000e+00> : vector<1xf32>
    %209 = vector.multi_reduction <add>, %208, %cst_19 [0] : vector<32x1xf32> to vector<1xf32>
    %210 = vector.shape_cast %209 : vector<1xf32> to vector<1x1xf32>
    %c0_20 = arith.constant 0 : index
    %c0_21 = arith.constant 0 : index
    %211 = vector.load %arg5[%c0_20, %c0_21] : memref<1x1xf32, #tpu.memory_space<vmem>>, vector<1x1xf32>
    %212 = arith.addf %210, %211 : vector<1x1xf32>
    %c0_22 = arith.constant 0 : index
    %c0_23 = arith.constant 0 : index
    %c0_24 = arith.constant 0 : index
    %213 = vector.load %arg6[%c0_22, %c0_23, %c0_24] : memref<1x1x1xf32, #tpu.memory_space<vmem>>, vector<1x1x1xf32>
    %214 = vector.shape_cast %213 : vector<1x1x1xf32> to vector<1x1xf32>
    %215 = vector.shape_cast %212 : vector<1x1xf32> to vector<1x1x1xf32>
    tpu.vector_store %arg6[%c0_22, %c0_23, %c0_24], %215 {strides = array<i32>} : memref<1x1x1xf32, #tpu.memory_space<vmem>>, vector<1x1x1xf32>,
    return
  }
  func.func @transform_0(%arg0: i32) -> (i32, i32, i32) {
    %c0_i32 = arith.constant 0 : i32
    %c0_i32_0 = arith.constant 0 : i32
    %c0_i32_1 = arith.constant 0 : i32
    return %arg0, %c0_i32, %c0_i32_0 : i32, i32, i32
  }
  func.func @transform_1(%arg0: i32) -> (i32, i32) {
    %c0_i32 = arith.constant 0 : i32
    %c0_i32_0 = arith.constant 0 : i32
    %c0_i32_1 = arith.constant 0 : i32
    return %c0_i32, %c0_i32_0 : i32, i32
  }
  func.func @transform_2(%arg0: i32) -> (i32, i32) {
    %c0_i32 = arith.constant 0 : i32
    %c0_i32_0 = arith.constant 0 : i32
    %c0_i32_1 = arith.constant 0 : i32
    return %c0_i32, %c0_i32_0 : i32, i32
  }
  func.func @transform_3(%arg0: i32) -> (i32, i32) {
    %c0_i32 = arith.constant 0 : i32
    %c0_i32_0 = arith.constant 0 : i32
    %c0_i32_1 = arith.constant 0 : i32
    return %c0_i32, %c0_i32_0 : i32, i32
  }
  func.func @transform_4(%arg0: i32) -> (i32, i32) {
    %c0_i32 = arith.constant 0 : i32
    %c0_i32_0 = arith.constant 0 : i32
    %c0_i32_1 = arith.constant 0 : i32
    return %c0_i32, %c0_i32_0 : i32, i32
  }
  func.func @transform_5(%arg0: i32) -> (i32, i32, i32) {
    %c0_i32 = arith.constant 0 : i32
    %c0_i32_0 = arith.constant 0 : i32
    %c0_i32_1 = arith.constant 0 : i32
    return %arg0, %c0_i32, %c0_i32_0 : i32, i32, i32
  }
}

</mosaic_0001>

<llo_original>
// kernel: isic_forward.1
$region0: #{isic_forward.1}
  #allocation0 [shape = 'u32[]', space=smem, size = 0x4, offset = 0x4, fixed_abs, tag = 'smem constant byte address 0x4 - core index']
  #allocation1 [shape = 'u32[144,128]{1,0:T(1,128)}', space=vmem, size = 0x12000, scoped, tag = 'internal scratch']
  #allocation2 [shape = 'f32[1,1]{1,0:T(1,128)S(1)}', space=vmem, size = 0x200, scoped, tag = 'scoped memory for isic_forward.1']
  %s0 = inlined_call_operand.vmem [shape: bf16[2,3,384], index: 0, kind: input, shape index: {}]
  %s1 = inlined_call_operand.vmem [shape: f32[32,27], index: 1, kind: input, shape index: {}]
  %s2 = inlined_call_operand.vmem [shape: f32[32,1], index: 2, kind: input, shape index: {}]
  %s3 = inlined_call_operand.vmem [shape: f32[32,1], index: 3, kind: input, shape index: {}]
  %s4 = inlined_call_operand.<no memory space> [shape: f32[1,1], index: 4, kind: input, shape index: {}]
  %s5 = inlined_call_operand.vmem [shape: f32[2,1,1], index: 5, kind: output, shape index: {}]
  %s6 = sld [smem:[#allocation0]]
  $region53: #{isic_forward.1} parent=0
    _
  %s8 = ssub.s32 1, %s6
  %s9 = scalar_select 0, %s8, %s6
  %v10 = vstv %s4
  %11 = vst [vmem:[#allocation2] sm:$0x1] %v10
  loop: start=0, step=1, limit=4
  $region2: #{isic_forward.1} parent=0 // loop_pre_header
    _
  $region3: #{isic_forward.1} parent=0 // loop_header
    %s13 = sphi 0, %s17
    %p14 = scmp.ge.s32.totalorder %s13, 4
    %s23 = sphi 0, %s25
    %s26 = sphi 0, %s23
    %s27 = sphi 0, %s26
    %s43 = sphi 0, %s27
    %s47 = sphi 0, %s47
    %s49 = sphi 0, %s47
    %s50 = sphi 0, %s49
    %s64 = sphi 0, %s50
    %s68 = sphi 0, %s68
    %s70 = sphi 0, %s68
    %s71 = sphi 0, %s70
    %s85 = sphi 0, %s71
    %s89 = sphi 0, %s89
    %s91 = sphi 0, %s89
    %s92 = sphi 0, %s91
    %s106 = sphi 0, %s92
    %s110 = sphi 0, %s110
    %s112 = sphi 0, %s110
    %s113 = sphi 0, %s112
    %s127 = sphi 0, %s113
    %s133 = sphi 0, %s135
    %s136 = sphi 0, %s133
    %s137 = sphi 0, %s136
    %s153 = sphi 0, %s137
  $region4: #{isic_forward.1} parent=0 // loop_header_branch
    %16 = sbr.rel (%p14) target = $region8
  $region5: #{isic_forward.1} parent=0 // loop_body
    %s18 = ssub.s32 %s13, 1
    %s19 = ssub.s32 %s13, 2
    %s20 = sadd.s32 %s13, 1
    %s21 = ssub.s32 %s13, %s20
    %p22 = scmp.eq.s32.totalorder %s21, 0
    %s24 = sadd.s32 %s23, 1
    %s25 = scalar_select %p22, %s23, %s24
    %p28 = pneg %p22
    %p29 = scmp.eq.s32.totalorder %s13, 1
    %p30 = por %p28, %p29
    %p31 = scmp.ne.s32.totalorder %s23, %s26
    %p32 = scmp.eq.s32.totalorder %s13, 0
    %p33 = por %p31, %p32
    %p34 = scmp.ne.s32.totalorder %s23, %s26
    %p35 = scmp.eq.s32.totalorder %s18, 1
    %p36 = por %p34, %p35
    %p37 = scmp.ne.s32.totalorder %s26, %s27
    %p38 = scmp.eq.s32.totalorder %s18, 0
    %p39 = por %p37, %p38
    %p40 = scmp.ne.s32.totalorder %s26, %s27
    %p41 = scmp.eq.s32.totalorder %s19, 1
    %p42 = por %p40, %p41
    %p44 = scmp.ne.s32.totalorder %s27, %s43
    %p45 = scmp.eq.s32.totalorder %s19, 0
    %p46 = por %p44, %p45
    %s48 = sadd.s32 %s47, 1
    %p51 = scmp.eq.s32.totalorder %s13, 1
    %p52 = scmp.ne.s32.totalorder %s47, %s49
    %p53 = scmp.eq.s32.totalorder %s13, 0
    %p54 = por %p52, %p53
    %p55 = scmp.ne.s32.totalorder %s47, %s49
    %p56 = scmp.eq.s32.totalorder %s18, 1
    %p57 = por %p55, %p56
    %p58 = scmp.ne.s32.totalorder %s49, %s50
    %p59 = scmp.eq.s32.totalorder %s18, 0
    %p60 = por %p58, %p59
    %p61 = scmp.ne.s32.totalorder %s49, %s50
    %p62 = scmp.eq.s32.totalorder %s19, 1
    %p63 = por %p61, %p62
    %p65 = scmp.ne.s32.totalorder %s50, %s64
    %p66 = scmp.eq.s32.totalorder %s19, 0
    %p67 = por %p65, %p66
    %s69 = sadd.s32 %s68, 1
    %p72 = scmp.eq.s32.totalorder %s13, 1
    %p73 = scmp.ne.s32.totalorder %s68, %s70
    %p74 = scmp.eq.s32.totalorder %s13, 0
    %p75 = por %p73, %p74
    %p76 = scmp.ne.s32.totalorder %s68, %s70
    %p77 = scmp.eq.s32.totalorder %s18, 1
    %p78 = por %p76, %p77
    %p79 = scmp.ne.s32.totalorder %s70, %s71
    %p80 = scmp.eq.s32.totalorder %s18, 0
    %p81 = por %p79, %p80
    %p82 = scmp.ne.s32.totalorder %s70, %s71
    %p83 = scmp.eq.s32.totalorder %s19, 1
    %p84 = por %p82, %p83
    %p86 = scmp.ne.s32.totalorder %s71, %s85
    %p87 = scmp.eq.s32.totalorder %s19, 0
    %p88 = por %p86, %p87
    %s90 = sadd.s32 %s89, 1
    %p93 = scmp.eq.s32.totalorder %s13, 1
    %p94 = scmp.ne.s32.totalorder %s89, %s91
    %p95 = scmp.eq.s32.totalorder %s13, 0
    %p96 = por %p94, %p95
    %p97 = scmp.ne.s32.totalorder %s89, %s91
    %p98 = scmp.eq.s32.totalorder %s18, 1
    %p99 = por %p97, %p98
    %p100 = scmp.ne.s32.totalorder %s91, %s92
    %p101 = scmp.eq.s32.totalorder %s18, 0
    %p102 = por %p100, %p101
    %p103 = scmp.ne.s32.totalorder %s91, %s92
    %p104 = scmp.eq.s32.totalorder %s19, 1
    %p105 = por %p103, %p104
    %p107 = scmp.ne.s32.totalorder %s92, %s106
    %p108 = scmp.eq.s32.totalorder %s19, 0
    %p109 = por %p107, %p108
    %s111 = sadd.s32 %s110, 1
    %p114 = scmp.eq.s32.totalorder %s13, 1
    %p115 = scmp.ne.s32.totalorder %s110, %s112
    %p116 = scmp.eq.s32.totalorder %s13, 0
    %p117 = por %p115, %p116
    %p118 = scmp.ne.s32.totalorder %s110, %s112
    %p119 = scmp.eq.s32.totalorder %s18, 1
    %p120 = por %p118, %p119
    %p121 = scmp.ne.s32.totalorder %s112, %s113
    %p122 = scmp.eq.s32.totalorder %s18, 0
    %p123 = por %p121, %p122
    %p124 = scmp.ne.s32.totalorder %s112, %s113
    %p125 = scmp.eq.s32.totalorder %s19, 1
    %p126 = por %p124, %p125
    %p128 = scmp.ne.s32.totalorder %s113, %s127
    %p129 = scmp.eq.s32.totalorder %s19, 0
    %p130 = por %p128, %p129
    %s131 = ssub.s32 %s13, %s20
    %p132 = scmp.eq.s32.totalorder %s131, 0
    %s134 = sadd.s32 %s133, 1
    %s135 = scalar_select %p132, %s133, %s134
    %p138 = pneg %p132
    %p139 = scmp.eq.s32.totalorder %s13, 1
    %p140 = por %p138, %p139
    %p141 = scmp.ne.s32.totalorder %s133, %s136
    %p142 = scmp.eq.s32.totalorder %s13, 0
    %p143 = por %p141, %p142
    %p144 = scmp.ne.s32.totalorder %s133, %s136
    %p145 = scmp.eq.s32.totalorder %s18, 1
    %p146 = por %p144, %p145
    %p147 = scmp.ne.s32.totalorder %s136, %s137
    %p148 = scmp.eq.s32.totalorder %s18, 0
    %p149 = por %p147, %p148
    %p150 = scmp.ne.s32.totalorder %s136, %s137
    %p151 = scmp.eq.s32.totalorder %s19, 1
    %p152 = por %p150, %p151
    %p154 = scmp.ne.s32.totalorder %s137, %s153
    %p155 = scmp.eq.s32.totalorder %s19, 0
    %p156 = por %p154, %p155
    %p157 = scmp.le.s32.totalorder 1, %s13
    %p158 = scmp.lt.s32.totalorder %s13, 3
    %p159 = pnand %p157, %p158
    %p160 = pneg %p159
    // Predicated region
    $region9: #{isic_forward.1} parent=5 // pred_check
      _
    $region10: #{isic_forward.1} parent=5 // pred_check_branch
      %162 = sbr.rel (%p159) target = $region12
    $region11: #{isic_forward.1} parent=5 // pred_region
      %s163 = ssub.s32 %s13, 1
      // Predicated region
      $region13: #{isic_forward.1} parent=11 // pred_check
        %p164 = pneg %p60
      $region14: #{isic_forward.1} parent=11 // pred_check_branch
        %166 = sbr.rel (%p164) target = $region16
      $region15: #{isic_forward.1} parent=11 // pred_region
        _
      $region16: #{isic_forward.1} parent=11 // pred_fallthru
        _
      // Predicated region
      $region17: #{isic_forward.1} parent=11 // pred_check
        %p167 = pneg %p81
      $region18: #{isic_forward.1} parent=11 // pred_check_branch
        %169 = sbr.rel (%p167) target = $region20
      $region19: #{isic_forward.1} parent=11 // pred_region
        _
      $region20: #{isic_forward.1} parent=11 // pred_fallthru
        _
      // Predicated region
      $region21: #{isic_forward.1} parent=11 // pred_check
        %p170 = pneg %p102
      $region22: #{isic_forward.1} parent=11 // pred_check_branch
        %172 = sbr.rel (%p170) target = $region24
      $region23: #{isic_forward.1} parent=11 // pred_region
        _
      $region24: #{isic_forward.1} parent=11 // pred_fallthru
        _
      // Predicated region
      $region25: #{isic_forward.1} parent=11 // pred_check
        %p173 = pneg %p123
      $region26: #{isic_forward.1} parent=11 // pred_check_branch
        %175 = sbr.rel (%p173) target = $region28
      $region27: #{isic_forward.1} parent=11 // pred_region
        _
      $region28: #{isic_forward.1} parent=11 // pred_fallthru
        _
    $region12: #{isic_forward.1} parent=5 // pred_fallthru
      _
    %p176 = scmp.lt.s32.totalorder %s13, 2
    // Predicated region
    $region29: #{isic_forward.1} parent=5 // pred_check
      %p177 = pneg %p176
    $region30: #{isic_forward.1} parent=5 // pred_check_branch
      %179 = sbr.rel (%p177) target = $region32
    $region31: #{isic_forward.1} parent=5 // pred_region
      // Predicated region
      $region33: #{isic_forward.1} parent=31 // pred_check
        %p180 = pneg %p33
      $region34: #{isic_forward.1} parent=31 // pred_check_branch
        %182 = sbr.rel (%p180) target = $region36
      $region35: #{isic_forward.1} parent=31 // pred_region
        %p183 = scmp.lt.s32.totalorder %s13, 1
        %s184 = scalar_select %p183, %s13, 1
        %s185 = smul.addr %s184, 3
        %s186 = smul.addr %s185, 2
        %s187 = scalar_lea.vmem %s0, %s186
      $region36: #{isic_forward.1} parent=31 // pred_fallthru
        _
    $region32: #{isic_forward.1} parent=5 // pred_fallthru
      _
    %p188 = scmp.le.s32.totalorder 1, %s13
    %p189 = scmp.lt.s32.totalorder %s13, 3
    %p190 = pnand %p188, %p189
    %p191 = pneg %p190
    // Predicated region
    $region37: #{isic_forward.1} parent=5 // pred_check
      _
    $region38: #{isic_forward.1} parent=5 // pred_check_branch
      %193 = sbr.rel (%p190) target = $region40
    $region39: #{isic_forward.1} parent=5 // pred_region
      %s194 = ssub.s32 %s13, 1
      %p195 = scmp.lt.s32.totalorder %s18, 1
      %s196 = scalar_select %p195, %s18, 1
      %s197 = smul.addr %s196, 3
      %s198 = smul.addr %s197, 2
      %s199 = scalar_lea.vmem %s0, %s198
      %p200 = pneg %p39
      %p201 = pneg %p36
      %p202 = pneg %p60
      %p203 = pneg %p57
      %p204 = pneg %p81
      %p205 = pneg %p78
      %p206 = pneg %p102
      %p207 = pneg %p99
      %p208 = pneg %p123
      %p209 = pneg %p120
      %p210 = pneg %p149
      %p211 = pneg %p146
      %p212 = scmp.lt.s32.totalorder %s18, 1
      %s213 = scalar_select %p212, %s18, 1
      %s214 = scalar_lea.vmem %s5, %s213
      %p215 = scmp.lt.s32.totalorder %s18, 1
      %s216 = scalar_select %p215, %s18, 1
      %s217 = smul.addr %s216, 3
      %s218 = smul.addr %s217, 2
      %s219 = scalar_lea.vmem %s0, %s218
      %p220 = scmp.lt.s32.totalorder %s18, 1
      %s221 = scalar_select %p220, %s18, 1
      %s222 = scalar_lea.vmem %s5, %s221
      %v223 = vld [vmem:[%s1] sm:$0xff]
      %v224 = vld [vmem:[%s1 + $0x8] sm:$0xff]
      %v225 = vld [vmem:[%s1 + $0x10] sm:$0xff]
      %v226 = vld [vmem:[%s1 + $0x18] sm:$0xff]
      %v227 = vld [vmem:[%s2] sm:$0xff]
      %v228 = vld [vmem:[%s2 + $0x8] sm:$0xff]
      %v229 = vld [vmem:[%s2 + $0x10] sm:$0xff]
      %v230 = vld [vmem:[%s2 + $0x18] sm:$0xff]
      %v231 = vlaneseq
      %v232 = vand.u32 %v231, 127
      %v233 = vadd.s32 %v232, 128
      %v234 = vadd.s32 %v232, 256
      %vm235 = vcmp.lt.s32.totalorder %v232, 0
      %v236 = vsub.s32 0, %v232
      %v237 = vsel %vm235, %v236, %v232
      %v238 = vmul.u32.u64.compose %v237, 3817748708
      %v239 = vextract.low.u32 %v238
      %v240 = vextract.high.u32 %v238
      %v241 = vshrl.u32 %v240, 4
      %v242 = vmul.u32 %v241, 18
      %v243 = vsub.s32 %v237, %v242
      %v244 = vsub.s32 0, %v243
      %v245 = vsel %vm235, %v244, %v243
      %vm246 = vcmp.lt.s32.totalorder %v233, 0
      %v247 = vsub.s32 0, %v233
      %v248 = vsel %vm246, %v247, %v233
      %v249 = vmul.u32.u64.compose %v248, 3817748708
      %v250 = vextract.low.u32 %v249
      %v251 = vextract.high.u32 %v249
      %v252 = vshrl.u32 %v251, 4
      %v253 = vmul.u32 %v252, 18
      %v254 = vsub.s32 %v248, %v253
      %v255 = vsub.s32 0, %v254
      %v256 = vsel %vm246, %v255, %v254
      %vm257 = vcmp.lt.s32.totalorder %v234, 0
      %v258 = vsub.s32 0, %v234
      %v259 = vsel %vm257, %v258, %v234
      %v260 = vmul.u32.u64.compose %v259, 3817748708
      %v261 = vextract.low.u32 %v260
      %v262 = vextract.high.u32 %v260
      %v263 = vshrl.u32 %v262, 4
      %v264 = vmul.u32 %v263, 18
      %v265 = vsub.s32 %v259, %v264
      %v266 = vsub.s32 0, %v265
      %v267 = vsel %vm257, %v266, %v265
      %vm268 = vcmp.ne.s32.totalorder %v245, 0
      %vm269 = vcmp.ne.s32.totalorder %v256, 0
      %vm270 = vcmp.ne.s32.totalorder %v267, 0
      %vm271 = vcmp.lt.s32.totalorder %v245, 0
      %vm272 = vcmp.lt.s32.totalorder %v256, 0
      %vm273 = vcmp.lt.s32.totalorder %v267, 0
      %vm274 = vmand %vm271, %vm268
      %vm275 = vmand %vm272, %vm269
      %vm276 = vmand %vm273, %vm270
      %v277 = vadd.s32 %v245, 18
      %v278 = vadd.s32 %v256, 18
      %v279 = vadd.s32 %v267, 18
      %v280 = vsel %vm274, %v277, %v245
      %v281 = vsel %vm275, %v278, %v256
      %v282 = vsel %vm276, %v279, %v267
      %vm283 = vcmp.lt.s32.totalorder %v280, 16
      %vm284 = vcmp.lt.s32.totalorder %v281, 16
      %vm285 = vcmp.lt.s32.totalorder %v282, 16
      %v286 = vsel %vm283, 1, 0
      %v287 = vsel %vm284, 1, 0
      %v288 = vsel %vm285, 1, 0
      %v289 = vcvt.s32.f32 %v286
      %v290 = vcvt.s32.f32 %v287
      %v291 = vcvt.s32.f32 %v288
      %v292 = vld [vmem:[%s219] sm:$0x15]
      %v293 = vunpack.c.l.bf16 %v292
      %v294 = vunpack.c.h.bf16 %v292
      %296 = vset.pattern.permute.xlu0 0
      %297 = vperm.xlu0 %296, %v223
      %v298 = vpop.permute.xlu0 %297
      %301 = vset.pattern.permute.xlu0 0
      %302 = vperm.xlu0 %301, %v224
      %v303 = vpop.permute.xlu0 %302
      %306 = vset.pattern.permute.xlu0 0
      %307 = vperm.xlu0 %306, %v225
      %v308 = vpop.permute.xlu0 %307
      %311 = vset.pattern.permute.xlu0 0
      %312 = vperm.xlu0 %311, %v226
      %v313 = vpop.permute.xlu0 %312
      %v317 = vlaneseq
      %v318 = vshrl.u32 %v317, 7
      %v319 = vsub.s32 0, %v318
      %v320 = vrot.slane %v293, %v319
      %v321 = vlaneseq
      %v322 = vshrl.u32 %v321, 7
      %v323 = vsub.s32 4, %v322
      %v324 = vrot.slane %v293, %v323
      %v325 = vlaneseq
      %v326 = vshrl.u32 %v325, 7
      %v327 = vsub.s32 0, %v326
      %v328 = vrot.slane %v294, %v327
      %v332 = vlaneseq
      %v333 = vshrl.u32 %v332, 7
      %v334 = vsub.s32 0, %v333
      %v335 = vrot.slane %v320, %v334
      %v336 = vlaneseq
      %v337 = vshrl.u32 %v336, 7
      %v338 = vsub.s32 0, %v337
      %v339 = vrot.slane %v324, %v338
      %v340 = vlaneseq
      %v341 = vshrl.u32 %v340, 7
      %v342 = vsub.s32 0, %v341
      %v343 = vrot.slane %v328, %v342
      %v344 = vmul.f32 %v298, %v335
      %v345 = vmul.f32 %v298, %v339
      %v346 = vmul.f32 %v298, %v343
      %v347 = vmul.f32 %v303, %v335
      %v348 = vmul.f32 %v303, %v339
      %v349 = vmul.f32 %v303, %v343
      %v350 = vmul.f32 %v308, %v335
      %v351 = vmul.f32 %v308, %v339
      %v352 = vmul.f32 %v308, %v343
      %v353 = vmul.f32 %v313, %v335
      %v354 = vmul.f32 %v313, %v339
      %v355 = vmul.f32 %v313, %v343
      %v356 = vadd.f32 %v344, 0.0
      %v357 = vadd.f32 %v345, 0.0
      %v358 = vadd.f32 %v346, 0.0
      %v359 = vadd.f32 %v347, 0.0
      %v360 = vadd.f32 %v348, 0.0
      %v361 = vadd.f32 %v349, 0.0
      %v362 = vadd.f32 %v350, 0.0
      %v363 = vadd.f32 %v351, 0.0
      %v364 = vadd.f32 %v352, 0.0
      %v365 = vadd.f32 %v353, 0.0
      %v366 = vadd.f32 %v354, 0.0
      %v367 = vadd.f32 %v355, 0.0
      %368 = vset.pattern.permute.xlu0 3
      %369 = vperm.xlu0 %368, %v223
      %v370 = vpop.permute.xlu0 %369
      %372 = vset.pattern.permute.xlu0 3
      %373 = vperm.xlu0 %372, %v224
      %v374 = vpop.permute.xlu0 %373
      %376 = vset.pattern.permute.xlu0 3
      %377 = vperm.xlu0 %376, %v225
      %v378 = vpop.permute.xlu0 %377
      %380 = vset.pattern.permute.xlu0 3
      %381 = vperm.xlu0 %380, %v226
      %v382 = vpop.permute.xlu0 %381
      %v384 = vmul.f32 %v370, %v335
      %v385 = vmul.f32 %v370, %v339
      %v386 = vmul.f32 %v370, %v343
      %v387 = vmul.f32 %v374, %v335
      %v388 = vmul.f32 %v374, %v339
      %v389 = vmul.f32 %v374, %v343
      %v390 = vmul.f32 %v378, %v335
      %v391 = vmul.f32 %v378, %v339
      %v392 = vmul.f32 %v378, %v343
      %v393 = vmul.f32 %v382, %v335
      %v394 = vmul.f32 %v382, %v339
      %v395 = vmul.f32 %v382, %v343
      %408 = vrot.lane.b32.xlu0 %v384, 127
      %v409 = vpop.permute.xlu0 %408
      %410 = vrot.lane.b32.xlu0 %v385, 127
      %v411 = vpop.permute.xlu0 %410
      %412 = vrot.lane.b32.xlu0 %v386, 127
      %v413 = vpop.permute.xlu0 %412
      %414 = vrot.lane.b32.xlu0 %v387, 127
      %v415 = vpop.permute.xlu0 %414
      %416 = vrot.lane.b32.xlu0 %v388, 127
      %v417 = vpop.permute.xlu0 %416
      %418 = vrot.lane.b32.xlu0 %v389, 127
      %v419 = vpop.permute.xlu0 %418
      %420 = vrot.lane.b32.xlu0 %v390, 127
      %v421 = vpop.permute.xlu0 %420
      %422 = vrot.lane.b32.xlu0 %v391, 127
      %v423 = vpop.permute.xlu0 %422
      %424 = vrot.lane.b32.xlu0 %v392, 127
      %v425 = vpop.permute.xlu0 %424
      %426 = vrot.lane.b32.xlu0 %v393, 127
      %v427 = vpop.permute.xlu0 %426
      %428 = vrot.lane.b32.xlu0 %v394, 127
      %v429 = vpop.permute.xlu0 %428
      %430 = vrot.lane.b32.xlu0 %v395, 127
      %v431 = vpop.permute.xlu0 %430
      %vm432 = vcmask 1039360
      %v433 = vsel %vm432, %v409, %v411
      %v434 = vsel %vm432, %v411, %v413
      %v435 = vsel %vm432, %v415, %v417
      %v436 = vsel %vm432, %v417, %v419
      %v437 = vsel %vm432, %v421, %v423
      %v438 = vsel %vm432, %v423, %v425
      %v439 = vsel %vm432, %v427, %v429
      %v440 = vsel %vm432, %v429, %v431
      %v453 = vadd.f32 %v356, %v433
      %v454 = vadd.f32 %v357, %v434
      %v455 = vadd.f32 %v358, %v413
      %v456 = vadd.f32 %v359, %v435
      %v457 = vadd.f32 %v360, %v436
      %v458 = vadd.f32 %v361, %v419
      %v459 = vadd.f32 %v362, %v437
      %v460 = vadd.f32 %v363, %v438
      %v461 = vadd.f32 %v364, %v425
      %v462 = vadd.f32 %v365, %v439
      %v463 = vadd.f32 %v366, %v440
      %v464 = vadd.f32 %v367, %v431
      %465 = vset.pattern.permute.xlu0 6
      %466 = vperm.xlu0 %465, %v223
      %v467 = vpop.permute.xlu0 %466
      %469 = vset.pattern.permute.xlu0 6
      %470 = vperm.xlu0 %469, %v224
      %v471 = vpop.permute.xlu0 %470
      %473 = vset.pattern.permute.xlu0 6
      %474 = vperm.xlu0 %473, %v225
      %v475 = vpop.permute.xlu0 %474
      %477 = vset.pattern.permute.xlu0 6
      %478 = vperm.xlu0 %477, %v226
      %v479 = vpop.permute.xlu0 %478
      %v481 = vmul.f32 %v467, %v335
      %v482 = vmul.f32 %v467, %v339
      %v483 = vmul.f32 %v467, %v343
      %v484 = vmul.f32 %v471, %v335
      %v485 = vmul.f32 %v471, %v339
      %v486 = vmul.f32 %v471, %v343
      %v487 = vmul.f32 %v475, %v335
      %v488 = vmul.f32 %v475, %v339
      %v489 = vmul.f32 %v475, %v343
      %v490 = vmul.f32 %v479, %v335
      %v491 = vmul.f32 %v479, %v339
      %v492 = vmul.f32 %v479, %v343
      %505 = vrot.lane.b32.xlu0 %v481, 126
      %v506 = vpop.permute.xlu0 %505
      %507 = vrot.lane.b32.xlu0 %v482, 126
      %v508 = vpop.permute.xlu0 %507
      %509 = vrot.lane.b32.xlu0 %v483, 126
      %v510 = vpop.permute.xlu0 %509
      %511 = vrot.lane.b32.xlu0 %v484, 126
      %v512 = vpop.permute.xlu0 %511
      %513 = vrot.lane.b32.xlu0 %v485, 126
      %v514 = vpop.permute.xlu0 %513
      %515 = vrot.lane.b32.xlu0 %v486, 126
      %v516 = vpop.permute.xlu0 %515
      %517 = vrot.lane.b32.xlu0 %v487, 126
      %v518 = vpop.permute.xlu0 %517
      %519 = vrot.lane.b32.xlu0 %v488, 126
      %v520 = vpop.permute.xlu0 %519
      %521 = vrot.lane.b32.xlu0 %v489, 126
      %v522 = vpop.permute.xlu0 %521
      %523 = vrot.lane.b32.xlu0 %v490, 126
      %v524 = vpop.permute.xlu0 %523
      %525 = vrot.lane.b32.xlu0 %v491, 126
      %v526 = vpop.permute.xlu0 %525
      %527 = vrot.lane.b32.xlu0 %v492, 126
      %v528 = vpop.permute.xlu0 %527
      %vm529 = vcmask 1031168
      %v530 = vsel %vm529, %v506, %v508
      %v531 = vsel %vm529, %v508, %v510
      %v532 = vsel %vm529, %v512, %v514
      %v533 = vsel %vm529, %v514, %v516
      %v534 = vsel %vm529, %v518, %v520
      %v535 = vsel %vm529, %v520, %v522
      %v536 = vsel %vm529, %v524, %v526
      %v537 = vsel %vm529, %v526, %v528
      %v550 = vadd.f32 %v453, %v530
      %v551 = vadd.f32 %v454, %v531
      %v552 = vadd.f32 %v455, %v510
      %v553 = vadd.f32 %v456, %v532
      %v554 = vadd.f32 %v457, %v533
      %v555 = vadd.f32 %v458, %v516
      %v556 = vadd.f32 %v459, %v534
      %v557 = vadd.f32 %v460, %v535
      %v558 = vadd.f32 %v461, %v522
      %v559 = vadd.f32 %v462, %v536
      %v560 = vadd.f32 %v463, %v537
      %v561 = vadd.f32 %v464, %v528
      %562 = vset.pattern.permute.xlu0 9
      %563 = vperm.xlu0 %562, %v223
      %v564 = vpop.permute.xlu0 %563
      %566 = vset.pattern.permute.xlu0 9
      %567 = vperm.xlu0 %566, %v224
      %v568 = vpop.permute.xlu0 %567
      %570 = vset.pattern.permute.xlu0 9
      %571 = vperm.xlu0 %570, %v225
      %v572 = vpop.permute.xlu0 %571
      %574 = vset.pattern.permute.xlu0 9
      %575 = vperm.xlu0 %574, %v226
      %v576 = vpop.permute.xlu0 %575
      %v578 = vmul.f32 %v564, %v335
      %v579 = vmul.f32 %v564, %v339
      %v580 = vmul.f32 %v564, %v343
      %v581 = vmul.f32 %v568, %v335
      %v582 = vmul.f32 %v568, %v339
      %v583 = vmul.f32 %v568, %v343
      %v584 = vmul.f32 %v572, %v335
      %v585 = vmul.f32 %v572, %v339
      %v586 = vmul.f32 %v572, %v343
      %v587 = vmul.f32 %v576, %v335
      %v588 = vmul.f32 %v576, %v339
      %v589 = vmul.f32 %v576, %v343
      %602 = vrot.lane.b32.xlu0 %v578, 110
      %v603 = vpop.permute.xlu0 %602
      %604 = vrot.lane.b32.xlu0 %v579, 110
      %v605 = vpop.permute.xlu0 %604
      %606 = vrot.lane.b32.xlu0 %v580, 110
      %v607 = vpop.permute.xlu0 %606
      %608 = vrot.lane.b32.xlu0 %v581, 110
      %v609 = vpop.permute.xlu0 %608
      %610 = vrot.lane.b32.xlu0 %v582, 110
      %v611 = vpop.permute.xlu0 %610
      %612 = vrot.lane.b32.xlu0 %v583, 110
      %v613 = vpop.permute.xlu0 %612
      %614 = vrot.lane.b32.xlu0 %v584, 110
      %v615 = vpop.permute.xlu0 %614
      %616 = vrot.lane.b32.xlu0 %v585, 110
      %v617 = vpop.permute.xlu0 %616
      %618 = vrot.lane.b32.xlu0 %v586, 110
      %v619 = vpop.permute.xlu0 %618
      %620 = vrot.lane.b32.xlu0 %v587, 110
      %v621 = vpop.permute.xlu0 %620
      %622 = vrot.lane.b32.xlu0 %v588, 110
      %v623 = vpop.permute.xlu0 %622
      %624 = vrot.lane.b32.xlu0 %v589, 110
      %v625 = vpop.permute.xlu0 %624
      %vm626 = vcmask 900096
      %v627 = vsel %vm626, %v603, %v605
      %v628 = vsel %vm626, %v605, %v607
      %v629 = vsel %vm626, %v609, %v611
      %v630 = vsel %vm626, %v611, %v613
      %v631 = vsel %vm626, %v615, %v617
      %v632 = vsel %vm626, %v617, %v619
      %v633 = vsel %vm626, %v621, %v623
      %v634 = vsel %vm626, %v623, %v625
      %v647 = vadd.f32 %v550, %v627
      %v648 = vadd.f32 %v551, %v628
      %v649 = vadd.f32 %v552, %v607
      %v650 = vadd.f32 %v553, %v629
      %v651 = vadd.f32 %v554, %v630
      %v652 = vadd.f32 %v555, %v613
      %v653 = vadd.f32 %v556, %v631
      %v654 = vadd.f32 %v557, %v632
      %v655 = vadd.f32 %v558, %v619
      %v656 = vadd.f32 %v559, %v633
      %v657 = vadd.f32 %v560, %v634
      %v658 = vadd.f32 %v561, %v625
      %659 = vset.pattern.permute.xlu0 12
      %660 = vperm.xlu0 %659, %v223
      %v661 = vpop.permute.xlu0 %660
      %663 = vset.pattern.permute.xlu0 12
      %664 = vperm.xlu0 %663, %v224
      %v665 = vpop.permute.xlu0 %664
      %667 = vset.pattern.permute.xlu0 12
      %668 = vperm.xlu0 %667, %v225
      %v669 = vpop.permute.xlu0 %668
      %671 = vset.pattern.permute.xlu0 12
      %672 = vperm.xlu0 %671, %v226
      %v673 = vpop.permute.xlu0 %672
      %v675 = vmul.f32 %v661, %v335
      %v676 = vmul.f32 %v661, %v339
      %v677 = vmul.f32 %v661, %v343
      %v678 = vmul.f32 %v665, %v335
      %v679 = vmul.f32 %v665, %v339
      %v680 = vmul.f32 %v665, %v343
      %v681 = vmul.f32 %v669, %v335
      %v682 = vmul.f32 %v669, %v339
      %v683 = vmul.f32 %v669, %v343
      %v684 = vmul.f32 %v673, %v335
      %v685 = vmul.f32 %v673, %v339
      %v686 = vmul.f32 %v673, %v343
      %699 = vrot.lane.b32.xlu0 %v675, 109
      %v700 = vpop.permute.xlu0 %699
      %701 = vrot.lane.b32.xlu0 %v676, 109
      %v702 = vpop.permute.xlu0 %701
      %703 = vrot.lane.b32.xlu0 %v677, 109
      %v704 = vpop.permute.xlu0 %703
      %705 = vrot.lane.b32.xlu0 %v678, 109
      %v706 = vpop.permute.xlu0 %705
      %707 = vrot.lane.b32.xlu0 %v679, 109
      %v708 = vpop.permute.xlu0 %707
      %709 = vrot.lane.b32.xlu0 %v680, 109
      %v710 = vpop.permute.xlu0 %709
      %711 = vrot.lane.b32.xlu0 %v681, 109
      %v712 = vpop.permute.xlu0 %711
      %713 = vrot.lane.b32.xlu0 %v682, 109
      %v714 = vpop.permute.xlu0 %713
      %715 = vrot.lane.b32.xlu0 %v683, 109
      %v716 = vpop.permute.xlu0 %715
      %717 = vrot.lane.b32.xlu0 %v684, 109
      %v718 = vpop.permute.xlu0 %717
      %719 = vrot.lane.b32.xlu0 %v685, 109
      %v720 = vpop.permute.xlu0 %719
      %721 = vrot.lane.b32.xlu0 %v686, 109
      %v722 = vpop.permute.xlu0 %721
      %vm723 = vcmask 891904
      %v724 = vsel %vm723, %v700, %v702
      %v725 = vsel %vm723, %v702, %v704
      %v726 = vsel %vm723, %v706, %v708
      %v727 = vsel %vm723, %v708, %v710
      %v728 = vsel %vm723, %v712, %v714
      %v729 = vsel %vm723, %v714, %v716
      %v730 = vsel %vm723, %v718, %v720
      %v731 = vsel %vm723, %v720, %v722
      %v744 = vadd.f32 %v647, %v724
      %v745 = vadd.f32 %v648, %v725
      %v746 = vadd.f32 %v649, %v704
      %v747 = vadd.f32 %v650, %v726
      %v748 = vadd.f32 %v651, %v727
      %v749 = vadd.f32 %v652, %v710
      %v750 = vadd.f32 %v653, %v728
      %v751 = vadd.f32 %v654, %v729
      %v752 = vadd.f32 %v655, %v716
      %v753 = vadd.f32 %v656, %v730
      %v754 = vadd.f32 %v657, %v731
      %v755 = vadd.f32 %v658, %v722
      %756 = vset.pattern.permute.xlu0 15
      %757 = vperm.xlu0 %756, %v223
      %v758 = vpop.permute.xlu0 %757
      %760 = vset.pattern.permute.xlu0 15
      %761 = vperm.xlu0 %760, %v224
      %v762 = vpop.permute.xlu0 %761
      %764 = vset.pattern.permute.xlu0 15
      %765 = vperm.xlu0 %764, %v225
      %v766 = vpop.permute.xlu0 %765
      %768 = vset.pattern.permute.xlu0 15
      %769 = vperm.xlu0 %768, %v226
      %v770 = vpop.permute.xlu0 %769
      %v772 = vmul.f32 %v758, %v335
      %v773 = vmul.f32 %v758, %v339
      %v774 = vmul.f32 %v758, %v343
      %v775 = vmul.f32 %v762, %v335
      %v776 = vmul.f32 %v762, %v339
      %v777 = vmul.f32 %v762, %v343
      %v778 = vmul.f32 %v766, %v335
      %v779 = vmul.f32 %v766, %v339
      %v780 = vmul.f32 %v766, %v343
      %v781 = vmul.f32 %v770, %v335
      %v782 = vmul.f32 %v770, %v339
      %v783 = vmul.f32 %v770, %v343
      %796 = vrot.lane.b32.xlu0 %v772, 108
      %v797 = vpop.permute.xlu0 %796
      %798 = vrot.lane.b32.xlu0 %v773, 108
      %v799 = vpop.permute.xlu0 %798
      %800 = vrot.lane.b32.xlu0 %v774, 108
      %v801 = vpop.permute.xlu0 %800
      %802 = vrot.lane.b32.xlu0 %v775, 108
      %v803 = vpop.permute.xlu0 %802
      %804 = vrot.lane.b32.xlu0 %v776, 108
      %v805 = vpop.permute.xlu0 %804
      %806 = vrot.lane.b32.xlu0 %v777, 108
      %v807 = vpop.permute.xlu0 %806
      %808 = vrot.lane.b32.xlu0 %v778, 108
      %v809 = vpop.permute.xlu0 %808
      %810 = vrot.lane.b32.xlu0 %v779, 108
      %v811 = vpop.permute.xlu0 %810
      %812 = vrot.lane.b32.xlu0 %v780, 108
      %v813 = vpop.permute.xlu0 %812
      %814 = vrot.lane.b32.xlu0 %v781, 108
      %v815 = vpop.permute.xlu0 %814
      %816 = vrot.lane.b32.xlu0 %v782, 108
      %v817 = vpop.permute.xlu0 %816
      %818 = vrot.lane.b32.xlu0 %v783, 108
      %v819 = vpop.permute.xlu0 %818
      %vm820 = vcmask 883712
      %v821 = vsel %vm820, %v797, %v799
      %v822 = vsel %vm820, %v799, %v801
      %v823 = vsel %vm820, %v803, %v805
      %v824 = vsel %vm820, %v805, %v807
      %v825 = vsel %vm820, %v809, %v811
      %v826 = vsel %vm820, %v811, %v813
      %v827 = vsel %vm820, %v815, %v817
      %v828 = vsel %vm820, %v817, %v819
      %v841 = vadd.f32 %v744, %v821
      %v842 = vadd.f32 %v745, %v822
      %v843 = vadd.f32 %v746, %v801
      %v844 = vadd.f32 %v747, %v823
      %v845 = vadd.f32 %v748, %v824
      %v846 = vadd.f32 %v749, %v807
      %v847 = vadd.f32 %v750, %v825
      %v848 = vadd.f32 %v751, %v826
      %v849 = vadd.f32 %v752, %v813
      %v850 = vadd.f32 %v753, %v827
      %v851 = vadd.f32 %v754, %v828
      %v852 = vadd.f32 %v755, %v819
      %853 = vset.pattern.permute.xlu0 18
      %854 = vperm.xlu0 %853, %v223
      %v855 = vpop.permute.xlu0 %854
      %857 = vset.pattern.permute.xlu0 18
      %858 = vperm.xlu0 %857, %v224
      %v859 = vpop.permute.xlu0 %858
      %861 = vset.pattern.permute.xlu0 18
      %862 = vperm.xlu0 %861, %v225
      %v863 = vpop.permute.xlu0 %862
      %865 = vset.pattern.permute.xlu0 18
      %866 = vperm.xlu0 %865, %v226
      %v867 = vpop.permute.xlu0 %866
      %v869 = vmul.f32 %v855, %v335
      %v870 = vmul.f32 %v855, %v339
      %v871 = vmul.f32 %v855, %v343
      %v872 = vmul.f32 %v859, %v335
      %v873 = vmul.f32 %v859, %v339
      %v874 = vmul.f32 %v859, %v343
      %v875 = vmul.f32 %v863, %v335
      %v876 = vmul.f32 %v863, %v339
      %v877 = vmul.f32 %v863, %v343
      %v878 = vmul.f32 %v867, %v335
      %v879 = vmul.f32 %v867, %v339
      %v880 = vmul.f32 %v867, %v343
      %893 = vrot.lane.b32.xlu0 %v869, 92
      %v894 = vpop.permute.xlu0 %893
      %895 = vrot.lane.b32.xlu0 %v870, 92
      %v896 = vpop.permute.xlu0 %895
      %897 = vrot.lane.b32.xlu0 %v871, 92
      %v898 = vpop.permute.xlu0 %897
      %899 = vrot.lane.b32.xlu0 %v872, 92
      %v900 = vpop.permute.xlu0 %899
      %901 = vrot.lane.b32.xlu0 %v873, 92
      %v902 = vpop.permute.xlu0 %901
      %903 = vrot.lane.b32.xlu0 %v874, 92
      %v904 = vpop.permute.xlu0 %903
      %905 = vrot.lane.b32.xlu0 %v875, 92
      %v906 = vpop.permute.xlu0 %905
      %907 = vrot.lane.b32.xlu0 %v876, 92
      %v908 = vpop.permute.xlu0 %907
      %909 = vrot.lane.b32.xlu0 %v877, 92
      %v910 = vpop.permute.xlu0 %909
      %911 = vrot.lane.b32.xlu0 %v878, 92
      %v912 = vpop.permute.xlu0 %911
      %913 = vrot.lane.b32.xlu0 %v879, 92
      %v914 = vpop.permute.xlu0 %913
      %915 = vrot.lane.b32.xlu0 %v880, 92
      %v916 = vpop.permute.xlu0 %915
      %vm917 = vcmask 752640
      %v918 = vsel %vm917, %v894, %v896
      %v919 = vsel %vm917, %v896, %v898
      %v920 = vsel %vm917, %v900, %v902
      %v921 = vsel %vm917, %v902, %v904
      %v922 = vsel %vm917, %v906, %v908
      %v923 = vsel %vm917, %v908, %v910
      %v924 = vsel %vm917, %v912, %v914
      %v925 = vsel %vm917, %v914, %v916
      %v938 = vadd.f32 %v841, %v918
      %v939 = vadd.f32 %v842, %v919
      %v940 = vadd.f32 %v843, %v898
      %v941 = vadd.f32 %v844, %v920
      %v942 = vadd.f32 %v845, %v921
      %v943 = vadd.f32 %v846, %v904
      %v944 = vadd.f32 %v847, %v922
      %v945 = vadd.f32 %v848, %v923
      %v946 = vadd.f32 %v849, %v910
      %v947 = vadd.f32 %v850, %v924
      %v948 = vadd.f32 %v851, %v925
      %v949 = vadd.f32 %v852, %v916
      %950 = vset.pattern.permute.xlu0 21
      %951 = vperm.xlu0 %950, %v223
      %v952 = vpop.permute.xlu0 %951
      %954 = vset.pattern.permute.xlu0 21
      %955 = vperm.xlu0 %954, %v224
      %v956 = vpop.permute.xlu0 %955
      %958 = vset.pattern.permute.xlu0 21
      %959 = vperm.xlu0 %958, %v225
      %v960 = vpop.permute.xlu0 %959
      %962 = vset.pattern.permute.xlu0 21
      %963 = vperm.xlu0 %962, %v226
      %v964 = vpop.permute.xlu0 %963
      %v966 = vmul.f32 %v952, %v335
      %v967 = vmul.f32 %v952, %v339
      %v968 = vmul.f32 %v952, %v343
      %v969 = vmul.f32 %v956, %v335
      %v970 = vmul.f32 %v956, %v339
      %v971 = vmul.f32 %v956, %v343
      %v972 = vmul.f32 %v960, %v335
      %v973 = vmul.f32 %v960, %v339
      %v974 = vmul.f32 %v960, %v343
      %v975 = vmul.f32 %v964, %v335
      %v976 = vmul.f32 %v964, %v339
      %v977 = vmul.f32 %v964, %v343
      %990 = vrot.lane.b32.xlu0 %v966, 91
      %v991 = vpop.permute.xlu0 %990
      %992 = vrot.lane.b32.xlu0 %v967, 91
      %v993 = vpop.permute.xlu0 %992
      %994 = vrot.lane.b32.xlu0 %v968, 91
      %v995 = vpop.permute.xlu0 %994
      %996 = vrot.lane.b32.xlu0 %v969, 91
      %v997 = vpop.permute.xlu0 %996
      %998 = vrot.lane.b32.xlu0 %v970, 91
      %v999 = vpop.permute.xlu0 %998
      %1000 = vrot.lane.b32.xlu0 %v971, 91
      %v1001 = vpop.permute.xlu0 %1000
      %1002 = vrot.lane.b32.xlu0 %v972, 91
      %v1003 = vpop.permute.xlu0 %1002
      %1004 = vrot.lane.b32.xlu0 %v973, 91
      %v1005 = vpop.permute.xlu0 %1004
      %1006 = vrot.lane.b32.xlu0 %v974, 91
      %v1007 = vpop.permute.xlu0 %1006
      %1008 = vrot.lane.b32.xlu0 %v975, 91
      %v1009 = vpop.permute.xlu0 %1008
      %1010 = vrot.lane.b32.xlu0 %v976, 91
      %v1011 = vpop.permute.xlu0 %1010
      %1012 = vrot.lane.b32.xlu0 %v977, 91
      %v1013 = vpop.permute.xlu0 %1012
      %vm1014 = vcmask 744448
      %v1015 = vsel %vm1014, %v991, %v993
      %v1016 = vsel %vm1014, %v993, %v995
      %v1017 = vsel %vm1014, %v997, %v999
      %v1018 = vsel %vm1014, %v999, %v1001
      %v1019 = vsel %vm1014, %v1003, %v1005
      %v1020 = vsel %vm1014, %v1005, %v1007
      %v1021 = vsel %vm1014, %v1009, %v1011
      %v1022 = vsel %vm1014, %v1011, %v1013
      %v1035 = vadd.f32 %v938, %v1015
      %v1036 = vadd.f32 %v939, %v1016
      %v1037 = vadd.f32 %v940, %v995
      %v1038 = vadd.f32 %v941, %v1017
      %v1039 = vadd.f32 %v942, %v1018
      %v1040 = vadd.f32 %v943, %v1001
      %v1041 = vadd.f32 %v944, %v1019
      %v1042 = vadd.f32 %v945, %v1020
      %v1043 = vadd.f32 %v946, %v1007
      %v1044 = vadd.f32 %v947, %v1021
      %v1045 = vadd.f32 %v948, %v1022
      %v1046 = vadd.f32 %v949, %v1013
      %1047 = vset.pattern.permute.xlu0 24
      %1048 = vperm.xlu0 %1047, %v223
      %v1049 = vpop.permute.xlu0 %1048
      %1051 = vset.pattern.permute.xlu0 24
      %1052 = vperm.xlu0 %1051, %v224
      %v1053 = vpop.permute.xlu0 %1052
      %1055 = vset.pattern.permute.xlu0 24
      %1056 = vperm.xlu0 %1055, %v225
      %v1057 = vpop.permute.xlu0 %1056
      %1059 = vset.pattern.permute.xlu0 24
      %1060 = vperm.xlu0 %1059, %v226
      %v1061 = vpop.permute.xlu0 %1060
      %v1063 = vmul.f32 %v1049, %v335
      %v1064 = vmul.f32 %v1049, %v339
      %v1065 = vmul.f32 %v1049, %v343
      %v1066 = vmul.f32 %v1053, %v335
      %v1067 = vmul.f32 %v1053, %v339
      %v1068 = vmul.f32 %v1053, %v343
      %v1069 = vmul.f32 %v1057, %v335
      %v1070 = vmul.f32 %v1057, %v339
      %v1071 = vmul.f32 %v1057, %v343
      %v1072 = vmul.f32 %v1061, %v335
      %v1073 = vmul.f32 %v1061, %v339
      %v1074 = vmul.f32 %v1061, %v343
      %1087 = vrot.lane.b32.xlu0 %v1063, 90
      %v1088 = vpop.permute.xlu0 %1087
      %1089 = vrot.lane.b32.xlu0 %v1064, 90
      %v1090 = vpop.permute.xlu0 %1089
      %1091 = vrot.lane.b32.xlu0 %v1065, 90
      %v1092 = vpop.permute.xlu0 %1091
      %1093 = vrot.lane.b32.xlu0 %v1066, 90
      %v1094 = vpop.permute.xlu0 %1093
      %1095 = vrot.lane.b32.xlu0 %v1067, 90
      %v1096 = vpop.permute.xlu0 %1095
      %1097 = vrot.lane.b32.xlu0 %v1068, 90
      %v1098 = vpop.permute.xlu0 %1097
      %1099 = vrot.lane.b32.xlu0 %v1069, 90
      %v1100 = vpop.permute.xlu0 %1099
      %1101 = vrot.lane.b32.xlu0 %v1070, 90
      %v1102 = vpop.permute.xlu0 %1101
      %1103 = vrot.lane.b32.xlu0 %v1071, 90
      %v1104 = vpop.permute.xlu0 %1103
      %1105 = vrot.lane.b32.xlu0 %v1072, 90
      %v1106 = vpop.permute.xlu0 %1105
      %1107 = vrot.lane.b32.xlu0 %v1073, 90
      %v1108 = vpop.permute.xlu0 %1107
      %1109 = vrot.lane.b32.xlu0 %v1074, 90
      %v1110 = vpop.permute.xlu0 %1109
      %vm1111 = vcmask 736256
      %v1112 = vsel %vm1111, %v1088, %v1090
      %v1113 = vsel %vm1111, %v1090, %v1092
      %v1114 = vsel %vm1111, %v1094, %v1096
      %v1115 = vsel %vm1111, %v1096, %v1098
      %v1116 = vsel %vm1111, %v1100, %v1102
      %v1117 = vsel %vm1111, %v1102, %v1104
      %v1118 = vsel %vm1111, %v1106, %v1108
      %v1119 = vsel %vm1111, %v1108, %v1110
      %v1132 = vadd.f32 %v1035, %v1112
      %v1133 = vadd.f32 %v1036, %v1113
      %v1134 = vadd.f32 %v1037, %v1092
      %v1135 = vadd.f32 %v1038, %v1114
      %v1136 = vadd.f32 %v1039, %v1115
      %v1137 = vadd.f32 %v1040, %v1098
      %v1138 = vadd.f32 %v1041, %v1116
      %v1139 = vadd.f32 %v1042, %v1117
      %v1140 = vadd.f32 %v1043, %v1104
      %v1141 = vadd.f32 %v1044, %v1118
      %v1142 = vadd.f32 %v1045, %v1119
      %v1143 = vadd.f32 %v1046, %v1110
      %1144 = vset.pattern.permute.xlu0 1
      %1145 = vperm.xlu0 %1144, %v223
      %v1146 = vpop.permute.xlu0 %1145
      %1148 = vset.pattern.permute.xlu0 1
      %1149 = vperm.xlu0 %1148, %v224
      %v1150 = vpop.permute.xlu0 %1149
      %1152 = vset.pattern.permute.xlu0 1
      %1153 = vperm.xlu0 %1152, %v225
      %v1154 = vpop.permute.xlu0 %1153
      %1156 = vset.pattern.permute.xlu0 1
      %1157 = vperm.xlu0 %1156, %v226
      %v1158 = vpop.permute.xlu0 %1157
      %v1160 = vlaneseq
      %v1161 = vshrl.u32 %v1160, 7
      %v1162 = vsub.s32 1, %v1161
      %v1163 = vrot.slane %v293, %v1162
      %v1164 = vlaneseq
      %v1165 = vshrl.u32 %v1164, 7
      %v1166 = vsub.s32 5, %v1165
      %v1167 = vrot.slane %v293, %v1166
      %v1168 = vlaneseq
      %v1169 = vshrl.u32 %v1168, 7
      %v1170 = vsub.s32 1, %v1169
      %v1171 = vrot.slane %v294, %v1170
      %v1175 = vlaneseq
      %v1176 = vshrl.u32 %v1175, 7
      %v1177 = vsub.s32 1, %v1176
      %v1178 = vrot.slane %v1163, %v1177
      %v1179 = vlaneseq
      %v1180 = vshrl.u32 %v1179, 7
      %v1181 = vsub.s32 1, %v1180
      %v1182 = vrot.slane %v1167, %v1181
      %v1183 = vlaneseq
      %v1184 = vshrl.u32 %v1183, 7
      %v1185 = vsub.s32 1, %v1184
      %v1186 = vrot.slane %v1171, %v1185
      %v1187 = vmul.f32 %v1146, %v1178
      %v1188 = vmul.f32 %v1146, %v1182
      %v1189 = vmul.f32 %v1146, %v1186
      %v1190 = vmul.f32 %v1150, %v1178
      %v1191 = vmul.f32 %v1150, %v1182
      %v1192 = vmul.f32 %v1150, %v1186
      %v1193 = vmul.f32 %v1154, %v1178
      %v1194 = vmul.f32 %v1154, %v1182
      %v1195 = vmul.f32 %v1154, %v1186
      %v1196 = vmul.f32 %v1158, %v1178
      %v1197 = vmul.f32 %v1158, %v1182
      %v1198 = vmul.f32 %v1158, %v1186
      %v1199 = vadd.f32 %v1132, %v1187
      %v1200 = vadd.f32 %v1133, %v1188
      %v1201 = vadd.f32 %v1134, %v1189
      %v1202 = vadd.f32 %v1135, %v1190
      %v1203 = vadd.f32 %v1136, %v1191
      %v1204 = vadd.f32 %v1137, %v1192
      %v1205 = vadd.f32 %v1138, %v1193
      %v1206 = vadd.f32 %v1139, %v1194
      %v1207 = vadd.f32 %v1140, %v1195
      %v1208 = vadd.f32 %v1141, %v1196
      %v1209 = vadd.f32 %v1142, %v1197
      %v1210 = vadd.f32 %v1143, %v1198
      %1211 = vset.pattern.permute.xlu0 4
      %1212 = vperm.xlu0 %1211, %v223
      %v1213 = vpop.permute.xlu0 %1212
      %1215 = vset.pattern.permute.xlu0 4
      %1216 = vperm.xlu0 %1215, %v224
      %v1217 = vpop.permute.xlu0 %1216
      %1219 = vset.pattern.permute.xlu0 4
      %1220 = vperm.xlu0 %1219, %v225
      %v1221 = vpop.permute.xlu0 %1220
      %1223 = vset.pattern.permute.xlu0 4
      %1224 = vperm.xlu0 %1223, %v226
      %v1225 = vpop.permute.xlu0 %1224
      %v1227 = vmul.f32 %v1213, %v1178
      %v1228 = vmul.f32 %v1213, %v1182
      %v1229 = vmul.f32 %v1213, %v1186
      %v1230 = vmul.f32 %v1217, %v1178
      %v1231 = vmul.f32 %v1217, %v1182
      %v1232 = vmul.f32 %v1217, %v1186
      %v1233 = vmul.f32 %v1221, %v1178
      %v1234 = vmul.f32 %v1221, %v1182
      %v1235 = vmul.f32 %v1221, %v1186
      %v1236 = vmul.f32 %v1225, %v1178
      %v1237 = vmul.f32 %v1225, %v1182
      %v1238 = vmul.f32 %v1225, %v1186
      %1251 = vrot.lane.b32.xlu0 %v1227, 127
      %v1252 = vpop.permute.xlu0 %1251
      %1253 = vrot.lane.b32.xlu0 %v1228, 127
      %v1254 = vpop.permute.xlu0 %1253
      %1255 = vrot.lane.b32.xlu0 %v1229, 127
      %v1256 = vpop.permute.xlu0 %1255
      %1257 = vrot.lane.b32.xlu0 %v1230, 127
      %v1258 = vpop.permute.xlu0 %1257
      %1259 = vrot.lane.b32.xlu0 %v1231, 127
      %v1260 = vpop.permute.xlu0 %1259
      %1261 = vrot.lane.b32.xlu0 %v1232, 127
      %v1262 = vpop.permute.xlu0 %1261
      %1263 = vrot.lane.b32.xlu0 %v1233, 127
      %v1264 = vpop.permute.xlu0 %1263
      %1265 = vrot.lane.b32.xlu0 %v1234, 127
      %v1266 = vpop.permute.xlu0 %1265
      %1267 = vrot.lane.b32.xlu0 %v1235, 127
      %v1268 = vpop.permute.xlu0 %1267
      %1269 = vrot.lane.b32.xlu0 %v1236, 127
      %v1270 = vpop.permute.xlu0 %1269
      %1271 = vrot.lane.b32.xlu0 %v1237, 127
      %v1272 = vpop.permute.xlu0 %1271
      %1273 = vrot.lane.b32.xlu0 %v1238, 127
      %v1274 = vpop.permute.xlu0 %1273
      %v1275 = vsel %vm432, %v1252, %v1254
      %v1276 = vsel %vm432, %v1254, %v1256
      %v1277 = vsel %vm432, %v1258, %v1260
      %v1278 = vsel %vm432, %v1260, %v1262
      %v1279 = vsel %vm432, %v1264, %v1266
      %v1280 = vsel %vm432, %v1266, %v1268
      %v1281 = vsel %vm432, %v1270, %v1272
      %v1282 = vsel %vm432, %v1272, %v1274
      %v1295 = vadd.f32 %v1199, %v1275
      %v1296 = vadd.f32 %v1200, %v1276
      %v1297 = vadd.f32 %v1201, %v1256
      %v1298 = vadd.f32 %v1202, %v1277
      %v1299 = vadd.f32 %v1203, %v1278
      %v1300 = vadd.f32 %v1204, %v1262
      %v1301 = vadd.f32 %v1205, %v1279
      %v1302 = vadd.f32 %v1206, %v1280
      %v1303 = vadd.f32 %v1207, %v1268
      %v1304 = vadd.f32 %v1208, %v1281
      %v1305 = vadd.f32 %v1209, %v1282
      %v1306 = vadd.f32 %v1210, %v1274
      %1307 = vset.pattern.permute.xlu0 7
      %1308 = vperm.xlu0 %1307, %v223
      %v1309 = vpop.permute.xlu0 %1308
      %1311 = vset.pattern.permute.xlu0 7
      %1312 = vperm.xlu0 %1311, %v224
      %v1313 = vpop.permute.xlu0 %1312
      %1315 = vset.pattern.permute.xlu0 7
      %1316 = vperm.xlu0 %1315, %v225
      %v1317 = vpop.permute.xlu0 %1316
      %1319 = vset.pattern.permute.xlu0 7
      %1320 = vperm.xlu0 %1319, %v226
      %v1321 = vpop.permute.xlu0 %1320
      %v1323 = vmul.f32 %v1309, %v1178
      %v1324 = vmul.f32 %v1309, %v1182
      %v1325 = vmul.f32 %v1309, %v1186
      %v1326 = vmul.f32 %v1313, %v1178
      %v1327 = vmul.f32 %v1313, %v1182
      %v1328 = vmul.f32 %v1313, %v1186
      %v1329 = vmul.f32 %v1317, %v1178
      %v1330 = vmul.f32 %v1317, %v1182
      %v1331 = vmul.f32 %v1317, %v1186
      %v1332 = vmul.f32 %v1321, %v1178
      %v1333 = vmul.f32 %v1321, %v1182
      %v1334 = vmul.f32 %v1321, %v1186
      %1347 = vrot.lane.b32.xlu0 %v1323, 126
      %v1348 = vpop.permute.xlu0 %1347
      %1349 = vrot.lane.b32.xlu0 %v1324, 126
      %v1350 = vpop.permute.xlu0 %1349
      %1351 = vrot.lane.b32.xlu0 %v1325, 126
      %v1352 = vpop.permute.xlu0 %1351
      %1353 = vrot.lane.b32.xlu0 %v1326, 126
      %v1354 = vpop.permute.xlu0 %1353
      %1355 = vrot.lane.b32.xlu0 %v1327, 126
      %v1356 = vpop.permute.xlu0 %1355
      %1357 = vrot.lane.b32.xlu0 %v1328, 126
      %v1358 = vpop.permute.xlu0 %1357
      %1359 = vrot.lane.b32.xlu0 %v1329, 126
      %v1360 = vpop.permute.xlu0 %1359
      %1361 = vrot.lane.b32.xlu0 %v1330, 126
      %v1362 = vpop.permute.xlu0 %1361
      %1363 = vrot.lane.b32.xlu0 %v1331, 126
      %v1364 = vpop.permute.xlu0 %1363
      %1365 = vrot.lane.b32.xlu0 %v1332, 126
      %v1366 = vpop.permute.xlu0 %1365
      %1367 = vrot.lane.b32.xlu0 %v1333, 126
      %v1368 = vpop.permute.xlu0 %1367
      %1369 = vrot.lane.b32.xlu0 %v1334, 126
      %v1370 = vpop.permute.xlu0 %1369
      %v1371 = vsel %vm529, %v1348, %v1350
      %v1372 = vsel %vm529, %v1350, %v1352
      %v1373 = vsel %vm529, %v1354, %v1356
      %v1374 = vsel %vm529, %v1356, %v1358
      %v1375 = vsel %vm529, %v1360, %v1362
      %v1376 = vsel %vm529, %v1362, %v1364
      %v1377 = vsel %vm529, %v1366, %v1368
      %v1378 = vsel %vm529, %v1368, %v1370
      %v1391 = vadd.f32 %v1295, %v1371
      %v1392 = vadd.f32 %v1296, %v1372
      %v1393 = vadd.f32 %v1297, %v1352
      %v1394 = vadd.f32 %v1298, %v1373
      %v1395 = vadd.f32 %v1299, %v1374
      %v1396 = vadd.f32 %v1300, %v1358
      %v1397 = vadd.f32 %v1301, %v1375
      %v1398 = vadd.f32 %v1302, %v1376
      %v1399 = vadd.f32 %v1303, %v1364
      %v1400 = vadd.f32 %v1304, %v1377
      %v1401 = vadd.f32 %v1305, %v1378
      %v1402 = vadd.f32 %v1306, %v1370
      %1403 = vset.pattern.permute.xlu0 10
      %1404 = vperm.xlu0 %1403, %v223
      %v1405 = vpop.permute.xlu0 %1404
      %1407 = vset.pattern.permute.xlu0 10
      %1408 = vperm.xlu0 %1407, %v224
      %v1409 = vpop.permute.xlu0 %1408
      %1411 = vset.pattern.permute.xlu0 10
      %1412 = vperm.xlu0 %1411, %v225
      %v1413 = vpop.permute.xlu0 %1412
      %1415 = vset.pattern.permute.xlu0 10
      %1416 = vperm.xlu0 %1415, %v226
      %v1417 = vpop.permute.xlu0 %1416
      %v1419 = vmul.f32 %v1405, %v1178
      %v1420 = vmul.f32 %v1405, %v1182
      %v1421 = vmul.f32 %v1405, %v1186
      %v1422 = vmul.f32 %v1409, %v1178
      %v1423 = vmul.f32 %v1409, %v1182
      %v1424 = vmul.f32 %v1409, %v1186
      %v1425 = vmul.f32 %v1413, %v1178
      %v1426 = vmul.f32 %v1413, %v1182
      %v1427 = vmul.f32 %v1413, %v1186
      %v1428 = vmul.f32 %v1417, %v1178
      %v1429 = vmul.f32 %v1417, %v1182
      %v1430 = vmul.f32 %v1417, %v1186
      %1443 = vrot.lane.b32.xlu0 %v1419, 110
      %v1444 = vpop.permute.xlu0 %1443
      %1445 = vrot.lane.b32.xlu0 %v1420, 110
      %v1446 = vpop.permute.xlu0 %1445
      %1447 = vrot.lane.b32.xlu0 %v1421, 110
      %v1448 = vpop.permute.xlu0 %1447
      %1449 = vrot.lane.b32.xlu0 %v1422, 110
      %v1450 = vpop.permute.xlu0 %1449
      %1451 = vrot.lane.b32.xlu0 %v1423, 110
      %v1452 = vpop.permute.xlu0 %1451
      %1453 = vrot.lane.b32.xlu0 %v1424, 110
      %v1454 = vpop.permute.xlu0 %1453
      %1455 = vrot.lane.b32.xlu0 %v1425, 110
      %v1456 = vpop.permute.xlu0 %1455
      %1457 = vrot.lane.b32.xlu0 %v1426, 110
      %v1458 = vpop.permute.xlu0 %1457
      %1459 = vrot.lane.b32.xlu0 %v1427, 110
      %v1460 = vpop.permute.xlu0 %1459
      %1461 = vrot.lane.b32.xlu0 %v1428, 110
      %v1462 = vpop.permute.xlu0 %1461
      %1463 = vrot.lane.b32.xlu0 %v1429, 110
      %v1464 = vpop.permute.xlu0 %1463
      %1465 = vrot.lane.b32.xlu0 %v1430, 110
      %v1466 = vpop.permute.xlu0 %1465
      %v1467 = vsel %vm626, %v1444, %v1446
      %v1468 = vsel %vm626, %v1446, %v1448
      %v1469 = vsel %vm626, %v1450, %v1452
      %v1470 = vsel %vm626, %v1452, %v1454
      %v1471 = vsel %vm626, %v1456, %v1458
      %v1472 = vsel %vm626, %v1458, %v1460
      %v1473 = vsel %vm626, %v1462, %v1464
      %v1474 = vsel %vm626, %v1464, %v1466
      %v1487 = vadd.f32 %v1391, %v1467
      %v1488 = vadd.f32 %v1392, %v1468
      %v1489 = vadd.f32 %v1393, %v1448
      %v1490 = vadd.f32 %v1394, %v1469
      %v1491 = vadd.f32 %v1395, %v1470
      %v1492 = vadd.f32 %v1396, %v1454
      %v1493 = vadd.f32 %v1397, %v1471
      %v1494 = vadd.f32 %v1398, %v1472
      %v1495 = vadd.f32 %v1399, %v1460
      %v1496 = vadd.f32 %v1400, %v1473
      %v1497 = vadd.f32 %v1401, %v1474
      %v1498 = vadd.f32 %v1402, %v1466
      %1499 = vset.pattern.permute.xlu0 13
      %1500 = vperm.xlu0 %1499, %v223
      %v1501 = vpop.permute.xlu0 %1500
      %1503 = vset.pattern.permute.xlu0 13
      %1504 = vperm.xlu0 %1503, %v224
      %v1505 = vpop.permute.xlu0 %1504
      %1507 = vset.pattern.permute.xlu0 13
      %1508 = vperm.xlu0 %1507, %v225
      %v1509 = vpop.permute.xlu0 %1508
      %1511 = vset.pattern.permute.xlu0 13
      %1512 = vperm.xlu0 %1511, %v226
      %v1513 = vpop.permute.xlu0 %1512
      %v1515 = vmul.f32 %v1501, %v1178
      %v1516 = vmul.f32 %v1501, %v1182
      %v1517 = vmul.f32 %v1501, %v1186
      %v1518 = vmul.f32 %v1505, %v1178
      %v1519 = vmul.f32 %v1505, %v1182
      %v1520 = vmul.f32 %v1505, %v1186
      %v1521 = vmul.f32 %v1509, %v1178
      %v1522 = vmul.f32 %v1509, %v1182
      %v1523 = vmul.f32 %v1509, %v1186
      %v1524 = vmul.f32 %v1513, %v1178
      %v1525 = vmul.f32 %v1513, %v1182
      %v1526 = vmul.f32 %v1513, %v1186
      %1539 = vrot.lane.b32.xlu0 %v1515, 109
      %v1540 = vpop.permute.xlu0 %1539
      %1541 = vrot.lane.b32.xlu0 %v1516, 109
      %v1542 = vpop.permute.xlu0 %1541
      %1543 = vrot.lane.b32.xlu0 %v1517, 109
      %v1544 = vpop.permute.xlu0 %1543
      %1545 = vrot.lane.b32.xlu0 %v1518, 109
      %v1546 = vpop.permute.xlu0 %1545
      %1547 = vrot.lane.b32.xlu0 %v1519, 109
      %v1548 = vpop.permute.xlu0 %1547
      %1549 = vrot.lane.b32.xlu0 %v1520, 109
      %v1550 = vpop.permute.xlu0 %1549
      %1551 = vrot.lane.b32.xlu0 %v1521, 109
      %v1552 = vpop.permute.xlu0 %1551
      %1553 = vrot.lane.b32.xlu0 %v1522, 109
      %v1554 = vpop.permute.xlu0 %1553
      %1555 = vrot.lane.b32.xlu0 %v1523, 109
      %v1556 = vpop.permute.xlu0 %1555
      %1557 = vrot.lane.b32.xlu0 %v1524, 109
      %v1558 = vpop.permute.xlu0 %1557
      %1559 = vrot.lane.b32.xlu0 %v1525, 109
      %v1560 = vpop.permute.xlu0 %1559
      %1561 = vrot.lane.b32.xlu0 %v1526, 109
      %v1562 = vpop.permute.xlu0 %1561
      %v1563 = vsel %vm723, %v1540, %v1542
      %v1564 = vsel %vm723, %v1542, %v1544
      %v1565 = vsel %vm723, %v1546, %v1548
      %v1566 = vsel %vm723, %v1548, %v1550
      %v1567 = vsel %vm723, %v1552, %v1554
      %v1568 = vsel %vm723, %v1554, %v1556
      %v1569 = vsel %vm723, %v1558, %v1560
      %v1570 = vsel %vm723, %v1560, %v1562
      %v1583 = vadd.f32 %v1487, %v1563
      %v1584 = vadd.f32 %v1488, %v1564
      %v1585 = vadd.f32 %v1489, %v1544
      %v1586 = vadd.f32 %v1490, %v1565
      %v1587 = vadd.f32 %v1491, %v1566
      %v1588 = vadd.f32 %v1492, %v1550
      %v1589 = vadd.f32 %v1493, %v1567
      %v1590 = vadd.f32 %v1494, %v1568
      %v1591 = vadd.f32 %v1495, %v1556
      %v1592 = vadd.f32 %v1496, %v1569
      %v1593 = vadd.f32 %v1497, %v1570
      %v1594 = vadd.f32 %v1498, %v1562
      %1595 = vset.pattern.permute.xlu0 16
      %1596 = vperm.xlu0 %1595, %v223
      %v1597 = vpop.permute.xlu0 %1596
      %1599 = vset.pattern.permute.xlu0 16
      %1600 = vperm.xlu0 %1599, %v224
      %v1601 = vpop.permute.xlu0 %1600
      %1603 = vset.pattern.permute.xlu0 16
      %1604 = vperm.xlu0 %1603, %v225
      %v1605 = vpop.permute.xlu0 %1604
      %1607 = vset.pattern.permute.xlu0 16
      %1608 = vperm.xlu0 %1607, %v226
      %v1609 = vpop.permute.xlu0 %1608
      %v1611 = vmul.f32 %v1597, %v1178
      %v1612 = vmul.f32 %v1597, %v1182
      %v1613 = vmul.f32 %v1597, %v1186
      %v1614 = vmul.f32 %v1601, %v1178
      %v1615 = vmul.f32 %v1601, %v1182
      %v1616 = vmul.f32 %v1601, %v1186
      %v1617 = vmul.f32 %v1605, %v1178
      %v1618 = vmul.f32 %v1605, %v1182
      %v1619 = vmul.f32 %v1605, %v1186
      %v1620 = vmul.f32 %v1609, %v1178
      %v1621 = vmul.f32 %v1609, %v1182
      %v1622 = vmul.f32 %v1609, %v1186
      %1635 = vrot.lane.b32.xlu0 %v1611, 108
      %v1636 = vpop.permute.xlu0 %1635
      %1637 = vrot.lane.b32.xlu0 %v1612, 108
      %v1638 = vpop.permute.xlu0 %1637
      %1639 = vrot.lane.b32.xlu0 %v1613, 108
      %v1640 = vpop.permute.xlu0 %1639
      %1641 = vrot.lane.b32.xlu0 %v1614, 108
      %v1642 = vpop.permute.xlu0 %1641
      %1643 = vrot.lane.b32.xlu0 %v1615, 108
      %v1644 = vpop.permute.xlu0 %1643
      %1645 = vrot.lane.b32.xlu0 %v1616, 108
      %v1646 = vpop.permute.xlu0 %1645
      %1647 = vrot.lane.b32.xlu0 %v1617, 108
      %v1648 = vpop.permute.xlu0 %1647
      %1649 = vrot.lane.b32.xlu0 %v1618, 108
      %v1650 = vpop.permute.xlu0 %1649
      %1651 = vrot.lane.b32.xlu0 %v1619, 108
      %v1652 = vpop.permute.xlu0 %1651
      %1653 = vrot.lane.b32.xlu0 %v1620, 108
      %v1654 = vpop.permute.xlu0 %1653
      %1655 = vrot.lane.b32.xlu0 %v1621, 108
      %v1656 = vpop.permute.xlu0 %1655
      %1657 = vrot.lane.b32.xlu0 %v1622, 108
      %v1658 = vpop.permute.xlu0 %1657
      %v1659 = vsel %vm820, %v1636, %v1638
      %v1660 = vsel %vm820, %v1638, %v1640
      %v1661 = vsel %vm820, %v1642, %v1644
      %v1662 = vsel %vm820, %v1644, %v1646
      %v1663 = vsel %vm820, %v1648, %v1650
      %v1664 = vsel %vm820, %v1650, %v1652
      %v1665 = vsel %vm820, %v1654, %v1656
      %v1666 = vsel %vm820, %v1656, %v1658
      %v1679 = vadd.f32 %v1583, %v1659
      %v1680 = vadd.f32 %v1584, %v1660
      %v1681 = vadd.f32 %v1585, %v1640
      %v1682 = vadd.f32 %v1586, %v1661
      %v1683 = vadd.f32 %v1587, %v1662
      %v1684 = vadd.f32 %v1588, %v1646
      %v1685 = vadd.f32 %v1589, %v1663
      %v1686 = vadd.f32 %v1590, %v1664
      %v1687 = vadd.f32 %v1591, %v1652
      %v1688 = vadd.f32 %v1592, %v1665
      %v1689 = vadd.f32 %v1593, %v1666
      %v1690 = vadd.f32 %v1594, %v1658
      %1691 = vset.pattern.permute.xlu0 19
      %1692 = vperm.xlu0 %1691, %v223
      %v1693 = vpop.permute.xlu0 %1692
      %1695 = vset.pattern.permute.xlu0 19
      %1696 = vperm.xlu0 %1695, %v224
      %v1697 = vpop.permute.xlu0 %1696
      %1699 = vset.pattern.permute.xlu0 19
      %1700 = vperm.xlu0 %1699, %v225
      %v1701 = vpop.permute.xlu0 %1700
      %1703 = vset.pattern.permute.xlu0 19
      %1704 = vperm.xlu0 %1703, %v226
      %v1705 = vpop.permute.xlu0 %1704
      %v1707 = vmul.f32 %v1693, %v1178
      %v1708 = vmul.f32 %v1693, %v1182
      %v1709 = vmul.f32 %v1693, %v1186
      %v1710 = vmul.f32 %v1697, %v1178
      %v1711 = vmul.f32 %v1697, %v1182
      %v1712 = vmul.f32 %v1697, %v1186
      %v1713 = vmul.f32 %v1701, %v1178
      %v1714 = vmul.f32 %v1701, %v1182
      %v1715 = vmul.f32 %v1701, %v1186
      %v1716 = vmul.f32 %v1705, %v1178
      %v1717 = vmul.f32 %v1705, %v1182
      %v1718 = vmul.f32 %v1705, %v1186
      %1731 = vrot.lane.b32.xlu0 %v1707, 92
      %v1732 = vpop.permute.xlu0 %1731
      %1733 = vrot.lane.b32.xlu0 %v1708, 92
      %v1734 = vpop.permute.xlu0 %1733
      %1735 = vrot.lane.b32.xlu0 %v1709, 92
      %v1736 = vpop.permute.xlu0 %1735
      %1737 = vrot.lane.b32.xlu0 %v1710, 92
      %v1738 = vpop.permute.xlu0 %1737
      %1739 = vrot.lane.b32.xlu0 %v1711, 92
      %v1740 = vpop.permute.xlu0 %1739
      %1741 = vrot.lane.b32.xlu0 %v1712, 92
      %v1742 = vpop.permute.xlu0 %1741
      %1743 = vrot.lane.b32.xlu0 %v1713, 92
      %v1744 = vpop.permute.xlu0 %1743
      %1745 = vrot.lane.b32.xlu0 %v1714, 92
      %v1746 = vpop.permute.xlu0 %1745
      %1747 = vrot.lane.b32.xlu0 %v1715, 92
      %v1748 = vpop.permute.xlu0 %1747
      %1749 = vrot.lane.b32.xlu0 %v1716, 92
      %v1750 = vpop.permute.xlu0 %1749
      %1751 = vrot.lane.b32.xlu0 %v1717, 92
      %v1752 = vpop.permute.xlu0 %1751
      %1753 = vrot.lane.b32.xlu0 %v1718, 92
      %v1754 = vpop.permute.xlu0 %1753
      %v1755 = vsel %vm917, %v1732, %v1734
      %v1756 = vsel %vm917, %v1734, %v1736
      %v1757 = vsel %vm917, %v1738, %v1740
      %v1758 = vsel %vm917, %v1740, %v1742
      %v1759 = vsel %vm917, %v1744, %v1746
      %v1760 = vsel %vm917, %v1746, %v1748
      %v1761 = vsel %vm917, %v1750, %v1752
      %v1762 = vsel %vm917, %v1752, %v1754
      %v1775 = vadd.f32 %v1679, %v1755
      %v1776 = vadd.f32 %v1680, %v1756
      %v1777 = vadd.f32 %v1681, %v1736
      %v1778 = vadd.f32 %v1682, %v1757
      %v1779 = vadd.f32 %v1683, %v1758
      %v1780 = vadd.f32 %v1684, %v1742
      %v1781 = vadd.f32 %v1685, %v1759
      %v1782 = vadd.f32 %v1686, %v1760
      %v1783 = vadd.f32 %v1687, %v1748
      %v1784 = vadd.f32 %v1688, %v1761
      %v1785 = vadd.f32 %v1689, %v1762
      %v1786 = vadd.f32 %v1690, %v1754
      %1787 = vset.pattern.permute.xlu0 22
      %1788 = vperm.xlu0 %1787, %v223
      %v1789 = vpop.permute.xlu0 %1788
      %1791 = vset.pattern.permute.xlu0 22
      %1792 = vperm.xlu0 %1791, %v224
      %v1793 = vpop.permute.xlu0 %1792
      %1795 = vset.pattern.permute.xlu0 22
      %1796 = vperm.xlu0 %1795, %v225
      %v1797 = vpop.permute.xlu0 %1796
      %1799 = vset.pattern.permute.xlu0 22
      %1800 = vperm.xlu0 %1799, %v226
      %v1801 = vpop.permute.xlu0 %1800
      %v1803 = vmul.f32 %v1789, %v1178
      %v1804 = vmul.f32 %v1789, %v1182
      %v1805 = vmul.f32 %v1789, %v1186
      %v1806 = vmul.f32 %v1793, %v1178
      %v1807 = vmul.f32 %v1793, %v1182
      %v1808 = vmul.f32 %v1793, %v1186
      %v1809 = vmul.f32 %v1797, %v1178
      %v1810 = vmul.f32 %v1797, %v1182
      %v1811 = vmul.f32 %v1797, %v1186
      %v1812 = vmul.f32 %v1801, %v1178
      %v1813 = vmul.f32 %v1801, %v1182
      %v1814 = vmul.f32 %v1801, %v1186
      %1827 = vrot.lane.b32.xlu0 %v1803, 91
      %v1828 = vpop.permute.xlu0 %1827
      %1829 = vrot.lane.b32.xlu0 %v1804, 91
      %v1830 = vpop.permute.xlu0 %1829
      %1831 = vrot.lane.b32.xlu0 %v1805, 91
      %v1832 = vpop.permute.xlu0 %1831
      %1833 = vrot.lane.b32.xlu0 %v1806, 91
      %v1834 = vpop.permute.xlu0 %1833
      %1835 = vrot.lane.b32.xlu0 %v1807, 91
      %v1836 = vpop.permute.xlu0 %1835
      %1837 = vrot.lane.b32.xlu0 %v1808, 91
      %v1838 = vpop.permute.xlu0 %1837
      %1839 = vrot.lane.b32.xlu0 %v1809, 91
      %v1840 = vpop.permute.xlu0 %1839
      %1841 = vrot.lane.b32.xlu0 %v1810, 91
      %v1842 = vpop.permute.xlu0 %1841
      %1843 = vrot.lane.b32.xlu0 %v1811, 91
      %v1844 = vpop.permute.xlu0 %1843
      %1845 = vrot.lane.b32.xlu0 %v1812, 91
      %v1846 = vpop.permute.xlu0 %1845
      %1847 = vrot.lane.b32.xlu0 %v1813, 91
      %v1848 = vpop.permute.xlu0 %1847
      %1849 = vrot.lane.b32.xlu0 %v1814, 91
      %v1850 = vpop.permute.xlu0 %1849
      %v1851 = vsel %vm1014, %v1828, %v1830
      %v1852 = vsel %vm1014, %v1830, %v1832
      %v1853 = vsel %vm1014, %v1834, %v1836
      %v1854 = vsel %vm1014, %v1836, %v1838
      %v1855 = vsel %vm1014, %v1840, %v1842
      %v1856 = vsel %vm1014, %v1842, %v1844
      %v1857 = vsel %vm1014, %v1846, %v1848
      %v1858 = vsel %vm1014, %v1848, %v1850
      %v1871 = vadd.f32 %v1775, %v1851
      %v1872 = vadd.f32 %v1776, %v1852
      %v1873 = vadd.f32 %v1777, %v1832
      %v1874 = vadd.f32 %v1778, %v1853
      %v1875 = vadd.f32 %v1779, %v1854
      %v1876 = vadd.f32 %v1780, %v1838
      %v1877 = vadd.f32 %v1781, %v1855
      %v1878 = vadd.f32 %v1782, %v1856
      %v1879 = vadd.f32 %v1783, %v1844
      %v1880 = vadd.f32 %v1784, %v1857
      %v1881 = vadd.f32 %v1785, %v1858
      %v1882 = vadd.f32 %v1786, %v1850
      %1883 = vset.pattern.permute.xlu0 25
      %1884 = vperm.xlu0 %1883, %v223
      %v1885 = vpop.permute.xlu0 %1884
      %1887 = vset.pattern.permute.xlu0 25
      %1888 = vperm.xlu0 %1887, %v224
      %v1889 = vpop.permute.xlu0 %1888
      %1891 = vset.pattern.permute.xlu0 25
      %1892 = vperm.xlu0 %1891, %v225
      %v1893 = vpop.permute.xlu0 %1892
      %1895 = vset.pattern.permute.xlu0 25
      %1896 = vperm.xlu0 %1895, %v226
      %v1897 = vpop.permute.xlu0 %1896
      %v1899 = vmul.f32 %v1885, %v1178
      %v1900 = vmul.f32 %v1885, %v1182
      %v1901 = vmul.f32 %v1885, %v1186
      %v1902 = vmul.f32 %v1889, %v1178
      %v1903 = vmul.f32 %v1889, %v1182
      %v1904 = vmul.f32 %v1889, %v1186
      %v1905 = vmul.f32 %v1893, %v1178
      %v1906 = vmul.f32 %v1893, %v1182
      %v1907 = vmul.f32 %v1893, %v1186
      %v1908 = vmul.f32 %v1897, %v1178
      %v1909 = vmul.f32 %v1897, %v1182
      %v1910 = vmul.f32 %v1897, %v1186
      %1923 = vrot.lane.b32.xlu0 %v1899, 90
      %v1924 = vpop.permute.xlu0 %1923
      %1925 = vrot.lane.b32.xlu0 %v1900, 90
      %v1926 = vpop.permute.xlu0 %1925
      %1927 = vrot.lane.b32.xlu0 %v1901, 90
      %v1928 = vpop.permute.xlu0 %1927
      %1929 = vrot.lane.b32.xlu0 %v1902, 90
      %v1930 = vpop.permute.xlu0 %1929
      %1931 = vrot.lane.b32.xlu0 %v1903, 90
      %v1932 = vpop.permute.xlu0 %1931
      %1933 = vrot.lane.b32.xlu0 %v1904, 90
      %v1934 = vpop.permute.xlu0 %1933
      %1935 = vrot.lane.b32.xlu0 %v1905, 90
      %v1936 = vpop.permute.xlu0 %1935
      %1937 = vrot.lane.b32.xlu0 %v1906, 90
      %v1938 = vpop.permute.xlu0 %1937
      %1939 = vrot.lane.b32.xlu0 %v1907, 90
      %v1940 = vpop.permute.xlu0 %1939
      %1941 = vrot.lane.b32.xlu0 %v1908, 90
      %v1942 = vpop.permute.xlu0 %1941
      %1943 = vrot.lane.b32.xlu0 %v1909, 90
      %v1944 = vpop.permute.xlu0 %1943
      %1945 = vrot.lane.b32.xlu0 %v1910, 90
      %v1946 = vpop.permute.xlu0 %1945
      %v1947 = vsel %vm1111, %v1924, %v1926
      %v1948 = vsel %vm1111, %v1926, %v1928
      %v1949 = vsel %vm1111, %v1930, %v1932
      %v1950 = vsel %vm1111, %v1932, %v1934
      %v1951 = vsel %vm1111, %v1936, %v1938
      %v1952 = vsel %vm1111, %v1938, %v1940
      %v1953 = vsel %vm1111, %v1942, %v1944
      %v1954 = vsel %vm1111, %v1944, %v1946
      %v1967 = vadd.f32 %v1871, %v1947
      %v1968 = vadd.f32 %v1872, %v1948
      %v1969 = vadd.f32 %v1873, %v1928
      %v1970 = vadd.f32 %v1874, %v1949
      %v1971 = vadd.f32 %v1875, %v1950
      %v1972 = vadd.f32 %v1876, %v1934
      %v1973 = vadd.f32 %v1877, %v1951
      %v1974 = vadd.f32 %v1878, %v1952
      %v1975 = vadd.f32 %v1879, %v1940
      %v1976 = vadd.f32 %v1880, %v1953
      %v1977 = vadd.f32 %v1881, %v1954
      %v1978 = vadd.f32 %v1882, %v1946
      %v1979 = vld [vmem:[%s219] sm:$0x2a]
      %v1980 = vunpack.c.l.bf16 %v1979
      %v1981 = vunpack.c.h.bf16 %v1979
      %1982 = vset.pattern.permute.xlu0 2
      %1983 = vperm.xlu0 %1982, %v223
      %v1984 = vpop.permute.xlu0 %1983
      %1986 = vset.pattern.permute.xlu0 2
      %1987 = vperm.xlu0 %1986, %v224
      %v1988 = vpop.permute.xlu0 %1987
      %1990 = vset.pattern.permute.xlu0 2
      %1991 = vperm.xlu0 %1990, %v225
      %v1992 = vpop.permute.xlu0 %1991
      %1994 = vset.pattern.permute.xlu0 2
      %1995 = vperm.xlu0 %1994, %v226
      %v1996 = vpop.permute.xlu0 %1995
      %v2000 = vlaneseq
      %v2001 = vshrl.u32 %v2000, 7
      %v2002 = vsub.s32 2, %v2001
      %v2003 = vrot.slane %v1980, %v2002
      %v2004 = vlaneseq
      %v2005 = vshrl.u32 %v2004, 7
      %v2006 = vsub.s32 6, %v2005
      %v2007 = vrot.slane %v1980, %v2006
      %v2008 = vlaneseq
      %v2009 = vshrl.u32 %v2008, 7
      %v2010 = vsub.s32 2, %v2009
      %v2011 = vrot.slane %v1981, %v2010
      %v2015 = vlaneseq
      %v2016 = vshrl.u32 %v2015, 7
      %v2017 = vsub.s32 2, %v2016
      %v2018 = vrot.slane %v2003, %v2017
      %v2019 = vlaneseq
      %v2020 = vshrl.u32 %v2019, 7
      %v2021 = vsub.s32 2, %v2020
      %v2022 = vrot.slane %v2007, %v2021
      %v2023 = vlaneseq
      %v2024 = vshrl.u32 %v2023, 7
      %v2025 = vsub.s32 2, %v2024
      %v2026 = vrot.slane %v2011, %v2025
      %v2027 = vmul.f32 %v1984, %v2018
      %v2028 = vmul.f32 %v1984, %v2022
      %v2029 = vmul.f32 %v1984, %v2026
      %v2030 = vmul.f32 %v1988, %v2018
      %v2031 = vmul.f32 %v1988, %v2022
      %v2032 = vmul.f32 %v1988, %v2026
      %v2033 = vmul.f32 %v1992, %v2018
      %v2034 = vmul.f32 %v1992, %v2022
      %v2035 = vmul.f32 %v1992, %v2026
      %v2036 = vmul.f32 %v1996, %v2018
      %v2037 = vmul.f32 %v1996, %v2022
      %v2038 = vmul.f32 %v1996, %v2026
      %v2039 = vadd.f32 %v1967, %v2027
      %v2040 = vadd.f32 %v1968, %v2028
      %v2041 = vadd.f32 %v1969, %v2029
      %v2042 = vadd.f32 %v1970, %v2030
      %v2043 = vadd.f32 %v1971, %v2031
      %v2044 = vadd.f32 %v1972, %v2032
      %v2045 = vadd.f32 %v1973, %v2033
      %v2046 = vadd.f32 %v1974, %v2034
      %v2047 = vadd.f32 %v1975, %v2035
      %v2048 = vadd.f32 %v1976, %v2036
      %v2049 = vadd.f32 %v1977, %v2037
      %v2050 = vadd.f32 %v1978, %v2038
      %2051 = vset.pattern.permute.xlu0 5
      %2052 = vperm.xlu0 %2051, %v223
      %v2053 = vpop.permute.xlu0 %2052
      %2055 = vset.pattern.permute.xlu0 5
      %2056 = vperm.xlu0 %2055, %v224
      %v2057 = vpop.permute.xlu0 %2056
      %2059 = vset.pattern.permute.xlu0 5
      %2060 = vperm.xlu0 %2059, %v225
      %v2061 = vpop.permute.xlu0 %2060
      %2063 = vset.pattern.permute.xlu0 5
      %2064 = vperm.xlu0 %2063, %v226
      %v2065 = vpop.permute.xlu0 %2064
      %v2067 = vmul.f32 %v2053, %v2018
      %v2068 = vmul.f32 %v2053, %v2022
      %v2069 = vmul.f32 %v2053, %v2026
      %v2070 = vmul.f32 %v2057, %v2018
      %v2071 = vmul.f32 %v2057, %v2022
      %v2072 = vmul.f32 %v2057, %v2026
      %v2073 = vmul.f32 %v2061, %v2018
      %v2074 = vmul.f32 %v2061, %v2022
      %v2075 = vmul.f32 %v2061, %v2026
      %v2076 = vmul.f32 %v2065, %v2018
      %v2077 = vmul.f32 %v2065, %v2022
      %v2078 = vmul.f32 %v2065, %v2026
      %2091 = vrot.lane.b32.xlu0 %v2067, 127
      %v2092 = vpop.permute.xlu0 %2091
      %2093 = vrot.lane.b32.xlu0 %v2068, 127
      %v2094 = vpop.permute.xlu0 %2093
      %2095 = vrot.lane.b32.xlu0 %v2069, 127
      %v2096 = vpop.permute.xlu0 %2095
      %2097 = vrot.lane.b32.xlu0 %v2070, 127
      %v2098 = vpop.permute.xlu0 %2097
      %2099 = vrot.lane.b32.xlu0 %v2071, 127
      %v2100 = vpop.permute.xlu0 %2099
      %2101 = vrot.lane.b32.xlu0 %v2072, 127
      %v2102 = vpop.permute.xlu0 %2101
      %2103 = vrot.lane.b32.xlu0 %v2073, 127
      %v2104 = vpop.permute.xlu0 %2103
      %2105 = vrot.lane.b32.xlu0 %v2074, 127
      %v2106 = vpop.permute.xlu0 %2105
      %2107 = vrot.lane.b32.xlu0 %v2075, 127
      %v2108 = vpop.permute.xlu0 %2107
      %2109 = vrot.lane.b32.xlu0 %v2076, 127
      %v2110 = vpop.permute.xlu0 %2109
      %2111 = vrot.lane.b32.xlu0 %v2077, 127
      %v2112 = vpop.permute.xlu0 %2111
      %2113 = vrot.lane.b32.xlu0 %v2078, 127
      %v2114 = vpop.permute.xlu0 %2113
      %v2115 = vsel %vm432, %v2092, %v2094
      %v2116 = vsel %vm432, %v2094, %v2096
      %v2117 = vsel %vm432, %v2098, %v2100
      %v2118 = vsel %vm432, %v2100, %v2102
      %v2119 = vsel %vm432, %v2104, %v2106
      %v2120 = vsel %vm432, %v2106, %v2108
      %v2121 = vsel %vm432, %v2110, %v2112
      %v2122 = vsel %vm432, %v2112, %v2114
      %v2135 = vadd.f32 %v2039, %v2115
      %v2136 = vadd.f32 %v2040, %v2116
      %v2137 = vadd.f32 %v2041, %v2096
      %v2138 = vadd.f32 %v2042, %v2117
      %v2139 = vadd.f32 %v2043, %v2118
      %v2140 = vadd.f32 %v2044, %v2102
      %v2141 = vadd.f32 %v2045, %v2119
      %v2142 = vadd.f32 %v2046, %v2120
      %v2143 = vadd.f32 %v2047, %v2108
      %v2144 = vadd.f32 %v2048, %v2121
      %v2145 = vadd.f32 %v2049, %v2122
      %v2146 = vadd.f32 %v2050, %v2114
      %2147 = vset.pattern.permute.xlu0 8
      %2148 = vperm.xlu0 %2147, %v223
      %v2149 = vpop.permute.xlu0 %2148
      %2151 = vset.pattern.permute.xlu0 8
      %2152 = vperm.xlu0 %2151, %v224
      %v2153 = vpop.permute.xlu0 %2152
      %2155 = vset.pattern.permute.xlu0 8
      %2156 = vperm.xlu0 %2155, %v225
      %v2157 = vpop.permute.xlu0 %2156
      %2159 = vset.pattern.permute.xlu0 8
      %2160 = vperm.xlu0 %2159, %v226
      %v2161 = vpop.permute.xlu0 %2160
      %v2163 = vmul.f32 %v2149, %v2018
      %v2164 = vmul.f32 %v2149, %v2022
      %v2165 = vmul.f32 %v2149, %v2026
      %v2166 = vmul.f32 %v2153, %v2018
      %v2167 = vmul.f32 %v2153, %v2022
      %v2168 = vmul.f32 %v2153, %v2026
      %v2169 = vmul.f32 %v2157, %v2018
      %v2170 = vmul.f32 %v2157, %v2022
      %v2171 = vmul.f32 %v2157, %v2026
      %v2172 = vmul.f32 %v2161, %v2018
      %v2173 = vmul.f32 %v2161, %v2022
      %v2174 = vmul.f32 %v2161, %v2026
      %2187 = vrot.lane.b32.xlu0 %v2163, 126
      %v2188 = vpop.permute.xlu0 %2187
      %2189 = vrot.lane.b32.xlu0 %v2164, 126
      %v2190 = vpop.permute.xlu0 %2189
      %2191 = vrot.lane.b32.xlu0 %v2165, 126
      %v2192 = vpop.permute.xlu0 %2191
      %2193 = vrot.lane.b32.xlu0 %v2166, 126
      %v2194 = vpop.permute.xlu0 %2193
      %2195 = vrot.lane.b32.xlu0 %v2167, 126
      %v2196 = vpop.permute.xlu0 %2195
      %2197 = vrot.lane.b32.xlu0 %v2168, 126
      %v2198 = vpop.permute.xlu0 %2197
      %2199 = vrot.lane.b32.xlu0 %v2169, 126
      %v2200 = vpop.permute.xlu0 %2199
      %2201 = vrot.lane.b32.xlu0 %v2170, 126
      %v2202 = vpop.permute.xlu0 %2201
      %2203 = vrot.lane.b32.xlu0 %v2171, 126
      %v2204 = vpop.permute.xlu0 %2203
      %2205 = vrot.lane.b32.xlu0 %v2172, 126
      %v2206 = vpop.permute.xlu0 %2205
      %2207 = vrot.lane.b32.xlu0 %v2173, 126
      %v2208 = vpop.permute.xlu0 %2207
      %2209 = vrot.lane.b32.xlu0 %v2174, 126
      %v2210 = vpop.permute.xlu0 %2209
      %v2211 = vsel %vm529, %v2188, %v2190
      %v2212 = vsel %vm529, %v2190, %v2192
      %v2213 = vsel %vm529, %v2194, %v2196
      %v2214 = vsel %vm529, %v2196, %v2198
      %v2215 = vsel %vm529, %v2200, %v2202
      %v2216 = vsel %vm529, %v2202, %v2204
      %v2217 = vsel %vm529, %v2206, %v2208
      %v2218 = vsel %vm529, %v2208, %v2210
      %v2231 = vadd.f32 %v2135, %v2211
      %v2232 = vadd.f32 %v2136, %v2212
      %v2233 = vadd.f32 %v2137, %v2192
      %v2234 = vadd.f32 %v2138, %v2213
      %v2235 = vadd.f32 %v2139, %v2214
      %v2236 = vadd.f32 %v2140, %v2198
      %v2237 = vadd.f32 %v2141, %v2215
      %v2238 = vadd.f32 %v2142, %v2216
      %v2239 = vadd.f32 %v2143, %v2204
      %v2240 = vadd.f32 %v2144, %v2217
      %v2241 = vadd.f32 %v2145, %v2218
      %v2242 = vadd.f32 %v2146, %v2210
      %2243 = vset.pattern.permute.xlu0 11
      %2244 = vperm.xlu0 %2243, %v223
      %v2245 = vpop.permute.xlu0 %2244
      %2247 = vset.pattern.permute.xlu0 11
      %2248 = vperm.xlu0 %2247, %v224
      %v2249 = vpop.permute.xlu0 %2248
      %2251 = vset.pattern.permute.xlu0 11
      %2252 = vperm.xlu0 %2251, %v225
      %v2253 = vpop.permute.xlu0 %2252
      %2255 = vset.pattern.permute.xlu0 11
      %2256 = vperm.xlu0 %2255, %v226
      %v2257 = vpop.permute.xlu0 %2256
      %v2259 = vmul.f32 %v2245, %v2018
      %v2260 = vmul.f32 %v2245, %v2022
      %v2261 = vmul.f32 %v2245, %v2026
      %v2262 = vmul.f32 %v2249, %v2018
      %v2263 = vmul.f32 %v2249, %v2022
      %v2264 = vmul.f32 %v2249, %v2026
      %v2265 = vmul.f32 %v2253, %v2018
      %v2266 = vmul.f32 %v2253, %v2022
      %v2267 = vmul.f32 %v2253, %v2026
      %v2268 = vmul.f32 %v2257, %v2018
      %v2269 = vmul.f32 %v2257, %v2022
      %v2270 = vmul.f32 %v2257, %v2026
      %2283 = vrot.lane.b32.xlu0 %v2259, 110
      %v2284 = vpop.permute.xlu0 %2283
      %2285 = vrot.lane.b32.xlu0 %v2260, 110
      %v2286 = vpop.permute.xlu0 %2285
      %2287 = vrot.lane.b32.xlu0 %v2261, 110
      %v2288 = vpop.permute.xlu0 %2287
      %2289 = vrot.lane.b32.xlu0 %v2262, 110
      %v2290 = vpop.permute.xlu0 %2289
      %2291 = vrot.lane.b32.xlu0 %v2263, 110
      %v2292 = vpop.permute.xlu0 %2291
      %2293 = vrot.lane.b32.xlu0 %v2264, 110
      %v2294 = vpop.permute.xlu0 %2293
      %2295 = vrot.lane.b32.xlu0 %v2265, 110
      %v2296 = vpop.permute.xlu0 %2295
      %2297 = vrot.lane.b32.xlu0 %v2266, 110
      %v2298 = vpop.permute.xlu0 %2297
      %2299 = vrot.lane.b32.xlu0 %v2267, 110
      %v2300 = vpop.permute.xlu0 %2299
      %2301 = vrot.lane.b32.xlu0 %v2268, 110
      %v2302 = vpop.permute.xlu0 %2301
      %2303 = vrot.lane.b32.xlu0 %v2269, 110
      %v2304 = vpop.permute.xlu0 %2303
      %2305 = vrot.lane.b32.xlu0 %v2270, 110
      %v2306 = vpop.permute.xlu0 %2305
      %v2307 = vsel %vm626, %v2284, %v2286
      %v2308 = vsel %vm626, %v2286, %v2288
      %v2309 = vsel %vm626, %v2290, %v2292
      %v2310 = vsel %vm626, %v2292, %v2294
      %v2311 = vsel %vm626, %v2296, %v2298
      %v2312 = vsel %vm626, %v2298, %v2300
      %v2313 = vsel %vm626, %v2302, %v2304
      %v2314 = vsel %vm626, %v2304, %v2306
      %v2327 = vadd.f32 %v2231, %v2307
      %v2328 = vadd.f32 %v2232, %v2308
      %v2329 = vadd.f32 %v2233, %v2288
      %v2330 = vadd.f32 %v2234, %v2309
      %v2331 = vadd.f32 %v2235, %v2310
      %v2332 = vadd.f32 %v2236, %v2294
      %v2333 = vadd.f32 %v2237, %v2311
      %v2334 = vadd.f32 %v2238, %v2312
      %v2335 = vadd.f32 %v2239, %v2300
      %v2336 = vadd.f32 %v2240, %v2313
      %v2337 = vadd.f32 %v2241, %v2314
      %v2338 = vadd.f32 %v2242, %v2306
      %2339 = vset.pattern.permute.xlu0 14
      %2340 = vperm.xlu0 %2339, %v223
      %v2341 = vpop.permute.xlu0 %2340
      %2343 = vset.pattern.permute.xlu0 14
      %2344 = vperm.xlu0 %2343, %v224
      %v2345 = vpop.permute.xlu0 %2344
      %2347 = vset.pattern.permute.xlu0 14
      %2348 = vperm.xlu0 %2347, %v225
      %v2349 = vpop.permute.xlu0 %2348
      %2351 = vset.pattern.permute.xlu0 14
      %2352 = vperm.xlu0 %2351, %v226
      %v2353 = vpop.permute.xlu0 %2352
      %v2355 = vmul.f32 %v2341, %v2018
      %v2356 = vmul.f32 %v2341, %v2022
      %v2357 = vmul.f32 %v2341, %v2026
      %v2358 = vmul.f32 %v2345, %v2018
      %v2359 = vmul.f32 %v2345, %v2022
      %v2360 = vmul.f32 %v2345, %v2026
      %v2361 = vmul.f32 %v2349, %v2018
      %v2362 = vmul.f32 %v2349, %v2022
      %v2363 = vmul.f32 %v2349, %v2026
      %v2364 = vmul.f32 %v2353, %v2018
      %v2365 = vmul.f32 %v2353, %v2022
      %v2366 = vmul.f32 %v2353, %v2026
      %2379 = vrot.lane.b32.xlu0 %v2355, 109
      %v2380 = vpop.permute.xlu0 %2379
      %2381 = vrot.lane.b32.xlu0 %v2356, 109
      %v2382 = vpop.permute.xlu0 %2381
      %2383 = vrot.lane.b32.xlu0 %v2357, 109
      %v2384 = vpop.permute.xlu0 %2383
      %2385 = vrot.lane.b32.xlu0 %v2358, 109
      %v2386 = vpop.permute.xlu0 %2385
      %2387 = vrot.lane.b32.xlu0 %v2359, 109
      %v2388 = vpop.permute.xlu0 %2387
      %2389 = vrot.lane.b32.xlu0 %v2360, 109
      %v2390 = vpop.permute.xlu0 %2389
      %2391 = vrot.lane.b32.xlu0 %v2361, 109
      %v2392 = vpop.permute.xlu0 %2391
      %2393 = vrot.lane.b32.xlu0 %v2362, 109
      %v2394 = vpop.permute.xlu0 %2393
      %2395 = vrot.lane.b32.xlu0 %v2363, 109
      %v2396 = vpop.permute.xlu0 %2395
      %2397 = vrot.lane.b32.xlu0 %v2364, 109
      %v2398 = vpop.permute.xlu0 %2397
      %2399 = vrot.lane.b32.xlu0 %v2365, 109
      %v2400 = vpop.permute.xlu0 %2399
      %2401 = vrot.lane.b32.xlu0 %v2366, 109
      %v2402 = vpop.permute.xlu0 %2401
      %v2403 = vsel %vm723, %v2380, %v2382
      %v2404 = vsel %vm723, %v2382, %v2384
      %v2405 = vsel %vm723, %v2386, %v2388
      %v2406 = vsel %vm723, %v2388, %v2390
      %v2407 = vsel %vm723, %v2392, %v2394
      %v2408 = vsel %vm723, %v2394, %v2396
      %v2409 = vsel %vm723, %v2398, %v2400
      %v2410 = vsel %vm723, %v2400, %v2402
      %v2423 = vadd.f32 %v2327, %v2403
      %v2424 = vadd.f32 %v2328, %v2404
      %v2425 = vadd.f32 %v2329, %v2384
      %v2426 = vadd.f32 %v2330, %v2405
      %v2427 = vadd.f32 %v2331, %v2406
      %v2428 = vadd.f32 %v2332, %v2390
      %v2429 = vadd.f32 %v2333, %v2407
      %v2430 = vadd.f32 %v2334, %v2408
      %v2431 = vadd.f32 %v2335, %v2396
      %v2432 = vadd.f32 %v2336, %v2409
      %v2433 = vadd.f32 %v2337, %v2410
      %v2434 = vadd.f32 %v2338, %v2402
      %2435 = vset.pattern.permute.xlu0 17
      %2436 = vperm.xlu0 %2435, %v223
      %v2437 = vpop.permute.xlu0 %2436
      %2439 = vset.pattern.permute.xlu0 17
      %2440 = vperm.xlu0 %2439, %v224
      %v2441 = vpop.permute.xlu0 %2440
      %2443 = vset.pattern.permute.xlu0 17
      %2444 = vperm.xlu0 %2443, %v225
      %v2445 = vpop.permute.xlu0 %2444
      %2447 = vset.pattern.permute.xlu0 17
      %2448 = vperm.xlu0 %2447, %v226
      %v2449 = vpop.permute.xlu0 %2448
      %v2451 = vmul.f32 %v2437, %v2018
      %v2452 = vmul.f32 %v2437, %v2022
      %v2453 = vmul.f32 %v2437, %v2026
      %v2454 = vmul.f32 %v2441, %v2018
      %v2455 = vmul.f32 %v2441, %v2022
      %v2456 = vmul.f32 %v2441, %v2026
      %v2457 = vmul.f32 %v2445, %v2018
      %v2458 = vmul.f32 %v2445, %v2022
      %v2459 = vmul.f32 %v2445, %v2026
      %v2460 = vmul.f32 %v2449, %v2018
      %v2461 = vmul.f32 %v2449, %v2022
      %v2462 = vmul.f32 %v2449, %v2026
      %2475 = vrot.lane.b32.xlu0 %v2451, 108
      %v2476 = vpop.permute.xlu0 %2475
      %2477 = vrot.lane.b32.xlu0 %v2452, 108
      %v2478 = vpop.permute.xlu0 %2477
      %2479 = vrot.lane.b32.xlu0 %v2453, 108
      %v2480 = vpop.permute.xlu0 %2479
      %2481 = vrot.lane.b32.xlu0 %v2454, 108
      %v2482 = vpop.permute.xlu0 %2481
      %2483 = vrot.lane.b32.xlu0 %v2455, 108
      %v2484 = vpop.permute.xlu0 %2483
      %2485 = vrot.lane.b32.xlu0 %v2456, 108
      %v2486 = vpop.permute.xlu0 %2485
      %2487 = vrot.lane.b32.xlu0 %v2457, 108
      %v2488 = vpop.permute.xlu0 %2487
      %2489 = vrot.lane.b32.xlu0 %v2458, 108
      %v2490 = vpop.permute.xlu0 %2489
      %2491 = vrot.lane.b32.xlu0 %v2459, 108
      %v2492 = vpop.permute.xlu0 %2491
      %2493 = vrot.lane.b32.xlu0 %v2460, 108
      %v2494 = vpop.permute.xlu0 %2493
      %2495 = vrot.lane.b32.xlu0 %v2461, 108
      %v2496 = vpop.permute.xlu0 %2495
      %2497 = vrot.lane.b32.xlu0 %v2462, 108
      %v2498 = vpop.permute.xlu0 %2497
      %v2499 = vsel %vm820, %v2476, %v2478
      %v2500 = vsel %vm820, %v2478, %v2480
      %v2501 = vsel %vm820, %v2482, %v2484
      %v2502 = vsel %vm820, %v2484, %v2486
      %v2503 = vsel %vm820, %v2488, %v2490
      %v2504 = vsel %vm820, %v2490, %v2492
      %v2505 = vsel %vm820, %v2494, %v2496
      %v2506 = vsel %vm820, %v2496, %v2498
      %v2519 = vadd.f32 %v2423, %v2499
      %v2520 = vadd.f32 %v2424, %v2500
      %v2521 = vadd.f32 %v2425, %v2480
      %v2522 = vadd.f32 %v2426, %v2501
      %v2523 = vadd.f32 %v2427, %v2502
      %v2524 = vadd.f32 %v2428, %v2486
      %v2525 = vadd.f32 %v2429, %v2503
      %v2526 = vadd.f32 %v2430, %v2504
      %v2527 = vadd.f32 %v2431, %v2492
      %v2528 = vadd.f32 %v2432, %v2505
      %v2529 = vadd.f32 %v2433, %v2506
      %v2530 = vadd.f32 %v2434, %v2498
      %2531 = vset.pattern.permute.xlu0 20
      %2532 = vperm.xlu0 %2531, %v223
      %v2533 = vpop.permute.xlu0 %2532
      %2535 = vset.pattern.permute.xlu0 20
      %2536 = vperm.xlu0 %2535, %v224
      %v2537 = vpop.permute.xlu0 %2536
      %2539 = vset.pattern.permute.xlu0 20
      %2540 = vperm.xlu0 %2539, %v225
      %v2541 = vpop.permute.xlu0 %2540
      %2543 = vset.pattern.permute.xlu0 20
      %2544 = vperm.xlu0 %2543, %v226
      %v2545 = vpop.permute.xlu0 %2544
      %v2547 = vmul.f32 %v2533, %v2018
      %v2548 = vmul.f32 %v2533, %v2022
      %v2549 = vmul.f32 %v2533, %v2026
      %v2550 = vmul.f32 %v2537, %v2018
      %v2551 = vmul.f32 %v2537, %v2022
      %v2552 = vmul.f32 %v2537, %v2026
      %v2553 = vmul.f32 %v2541, %v2018
      %v2554 = vmul.f32 %v2541, %v2022
      %v2555 = vmul.f32 %v2541, %v2026
      %v2556 = vmul.f32 %v2545, %v2018
      %v2557 = vmul.f32 %v2545, %v2022
      %v2558 = vmul.f32 %v2545, %v2026
      %2571 = vrot.lane.b32.xlu0 %v2547, 92
      %v2572 = vpop.permute.xlu0 %2571
      %2573 = vrot.lane.b32.xlu0 %v2548, 92
      %v2574 = vpop.permute.xlu0 %2573
      %2575 = vrot.lane.b32.xlu0 %v2549, 92
      %v2576 = vpop.permute.xlu0 %2575
      %2577 = vrot.lane.b32.xlu0 %v2550, 92
      %v2578 = vpop.permute.xlu0 %2577
      %2579 = vrot.lane.b32.xlu0 %v2551, 92
      %v2580 = vpop.permute.xlu0 %2579
      %2581 = vrot.lane.b32.xlu0 %v2552, 92
      %v2582 = vpop.permute.xlu0 %2581
      %2583 = vrot.lane.b32.xlu0 %v2553, 92
      %v2584 = vpop.permute.xlu0 %2583
      %2585 = vrot.lane.b32.xlu0 %v2554, 92
      %v2586 = vpop.permute.xlu0 %2585
      %2587 = vrot.lane.b32.xlu0 %v2555, 92
      %v2588 = vpop.permute.xlu0 %2587
      %2589 = vrot.lane.b32.xlu0 %v2556, 92
      %v2590 = vpop.permute.xlu0 %2589
      %2591 = vrot.lane.b32.xlu0 %v2557, 92
      %v2592 = vpop.permute.xlu0 %2591
      %2593 = vrot.lane.b32.xlu0 %v2558, 92
      %v2594 = vpop.permute.xlu0 %2593
      %v2595 = vsel %vm917, %v2572, %v2574
      %v2596 = vsel %vm917, %v2574, %v2576
      %v2597 = vsel %vm917, %v2578, %v2580
      %v2598 = vsel %vm917, %v2580, %v2582
      %v2599 = vsel %vm917, %v2584, %v2586
      %v2600 = vsel %vm917, %v2586, %v2588
      %v2601 = vsel %vm917, %v2590, %v2592
      %v2602 = vsel %vm917, %v2592, %v2594
      %v2615 = vadd.f32 %v2519, %v2595
      %v2616 = vadd.f32 %v2520, %v2596
      %v2617 = vadd.f32 %v2521, %v2576
      %v2618 = vadd.f32 %v2522, %v2597
      %v2619 = vadd.f32 %v2523, %v2598
      %v2620 = vadd.f32 %v2524, %v2582
      %v2621 = vadd.f32 %v2525, %v2599
      %v2622 = vadd.f32 %v2526, %v2600
      %v2623 = vadd.f32 %v2527, %v2588
      %v2624 = vadd.f32 %v2528, %v2601
      %v2625 = vadd.f32 %v2529, %v2602
      %v2626 = vadd.f32 %v2530, %v2594
      %2627 = vset.pattern.permute.xlu0 23
      %2628 = vperm.xlu0 %2627, %v223
      %v2629 = vpop.permute.xlu0 %2628
      %2631 = vset.pattern.permute.xlu0 23
      %2632 = vperm.xlu0 %2631, %v224
      %v2633 = vpop.permute.xlu0 %2632
      %2635 = vset.pattern.permute.xlu0 23
      %2636 = vperm.xlu0 %2635, %v225
      %v2637 = vpop.permute.xlu0 %2636
      %2639 = vset.pattern.permute.xlu0 23
      %2640 = vperm.xlu0 %2639, %v226
      %v2641 = vpop.permute.xlu0 %2640
      %v2643 = vmul.f32 %v2629, %v2018
      %v2644 = vmul.f32 %v2629, %v2022
      %v2645 = vmul.f32 %v2629, %v2026
      %v2646 = vmul.f32 %v2633, %v2018
      %v2647 = vmul.f32 %v2633, %v2022
      %v2648 = vmul.f32 %v2633, %v2026
      %v2649 = vmul.f32 %v2637, %v2018
      %v2650 = vmul.f32 %v2637, %v2022
      %v2651 = vmul.f32 %v2637, %v2026
      %v2652 = vmul.f32 %v2641, %v2018
      %v2653 = vmul.f32 %v2641, %v2022
      %v2654 = vmul.f32 %v2641, %v2026
      %2667 = vrot.lane.b32.xlu0 %v2643, 91
      %v2668 = vpop.permute.xlu0 %2667
      %2669 = vrot.lane.b32.xlu0 %v2644, 91
      %v2670 = vpop.permute.xlu0 %2669
      %2671 = vrot.lane.b32.xlu0 %v2645, 91
      %v2672 = vpop.permute.xlu0 %2671
      %2673 = vrot.lane.b32.xlu0 %v2646, 91
      %v2674 = vpop.permute.xlu0 %2673
      %2675 = vrot.lane.b32.xlu0 %v2647, 91
      %v2676 = vpop.permute.xlu0 %2675
      %2677 = vrot.lane.b32.xlu0 %v2648, 91
      %v2678 = vpop.permute.xlu0 %2677
      %2679 = vrot.lane.b32.xlu0 %v2649, 91
      %v2680 = vpop.permute.xlu0 %2679
      %2681 = vrot.lane.b32.xlu0 %v2650, 91
      %v2682 = vpop.permute.xlu0 %2681
      %2683 = vrot.lane.b32.xlu0 %v2651, 91
      %v2684 = vpop.permute.xlu0 %2683
      %2685 = vrot.lane.b32.xlu0 %v2652, 91
      %v2686 = vpop.permute.xlu0 %2685
      %2687 = vrot.lane.b32.xlu0 %v2653, 91
      %v2688 = vpop.permute.xlu0 %2687
      %2689 = vrot.lane.b32.xlu0 %v2654, 91
      %v2690 = vpop.permute.xlu0 %2689
      %v2691 = vsel %vm1014, %v2668, %v2670
      %v2692 = vsel %vm1014, %v2670, %v2672
      %v2693 = vsel %vm1014, %v2674, %v2676
      %v2694 = vsel %vm1014, %v2676, %v2678
      %v2695 = vsel %vm1014, %v2680, %v2682
      %v2696 = vsel %vm1014, %v2682, %v2684
      %v2697 = vsel %vm1014, %v2686, %v2688
      %v2698 = vsel %vm1014, %v2688, %v2690
      %v2711 = vadd.f32 %v2615, %v2691
      %v2712 = vadd.f32 %v2616, %v2692
      %v2713 = vadd.f32 %v2617, %v2672
      %v2714 = vadd.f32 %v2618, %v2693
      %v2715 = vadd.f32 %v2619, %v2694
      %v2716 = vadd.f32 %v2620, %v2678
      %v2717 = vadd.f32 %v2621, %v2695
      %v2718 = vadd.f32 %v2622, %v2696
      %v2719 = vadd.f32 %v2623, %v2684
      %v2720 = vadd.f32 %v2624, %v2697
      %v2721 = vadd.f32 %v2625, %v2698
      %v2722 = vadd.f32 %v2626, %v2690
      %2723 = vset.pattern.permute.xlu0 26
      %2724 = vperm.xlu0 %2723, %v223
      %v2725 = vpop.permute.xlu0 %2724
      %2727 = vset.pattern.permute.xlu0 26
      %2728 = vperm.xlu0 %2727, %v224
      %v2729 = vpop.permute.xlu0 %2728
      %2731 = vset.pattern.permute.xlu0 26
      %2732 = vperm.xlu0 %2731, %v225
      %v2733 = vpop.permute.xlu0 %2732
      %2735 = vset.pattern.permute.xlu0 26
      %2736 = vperm.xlu0 %2735, %v226
      %v2737 = vpop.permute.xlu0 %2736
      %v2739 = vmul.f32 %v2725, %v2018
      %v2740 = vmul.f32 %v2725, %v2022
      %v2741 = vmul.f32 %v2725, %v2026
      %v2742 = vmul.f32 %v2729, %v2018
      %v2743 = vmul.f32 %v2729, %v2022
      %v2744 = vmul.f32 %v2729, %v2026
      %v2745 = vmul.f32 %v2733, %v2018
      %v2746 = vmul.f32 %v2733, %v2022
      %v2747 = vmul.f32 %v2733, %v2026
      %v2748 = vmul.f32 %v2737, %v2018
      %v2749 = vmul.f32 %v2737, %v2022
      %v2750 = vmul.f32 %v2737, %v2026
      %2763 = vrot.lane.b32.xlu0 %v2739, 90
      %v2764 = vpop.permute.xlu0 %2763
      %2765 = vrot.lane.b32.xlu0 %v2740, 90
      %v2766 = vpop.permute.xlu0 %2765
      %2767 = vrot.lane.b32.xlu0 %v2741, 90
      %v2768 = vpop.permute.xlu0 %2767
      %2769 = vrot.lane.b32.xlu0 %v2742, 90
      %v2770 = vpop.permute.xlu0 %2769
      %2771 = vrot.lane.b32.xlu0 %v2743, 90
      %v2772 = vpop.permute.xlu0 %2771
      %2773 = vrot.lane.b32.xlu0 %v2744, 90
      %v2774 = vpop.permute.xlu0 %2773
      %2775 = vrot.lane.b32.xlu0 %v2745, 90
      %v2776 = vpop.permute.xlu0 %2775
      %2777 = vrot.lane.b32.xlu0 %v2746, 90
      %v2778 = vpop.permute.xlu0 %2777
      %2779 = vrot.lane.b32.xlu0 %v2747, 90
      %v2780 = vpop.permute.xlu0 %2779
      %2781 = vrot.lane.b32.xlu0 %v2748, 90
      %v2782 = vpop.permute.xlu0 %2781
      %2783 = vrot.lane.b32.xlu0 %v2749, 90
      %v2784 = vpop.permute.xlu0 %2783
      %2785 = vrot.lane.b32.xlu0 %v2750, 90
      %v2786 = vpop.permute.xlu0 %2785
      %v2787 = vsel %vm1111, %v2764, %v2766
      %v2788 = vsel %vm1111, %v2766, %v2768
      %v2789 = vsel %vm1111, %v2770, %v2772
      %v2790 = vsel %vm1111, %v2772, %v2774
      %v2791 = vsel %vm1111, %v2776, %v2778
      %v2792 = vsel %vm1111, %v2778, %v2780
      %v2793 = vsel %vm1111, %v2782, %v2784
      %v2794 = vsel %vm1111, %v2784, %v2786
      %v2807 = vadd.f32 %v2711, %v2787
      %v2808 = vadd.f32 %v2712, %v2788
      %v2809 = vadd.f32 %v2713, %v2768
      %v2810 = vadd.f32 %v2714, %v2789
      %v2811 = vadd.f32 %v2715, %v2790
      %v2812 = vadd.f32 %v2716, %v2774
      %v2813 = vadd.f32 %v2717, %v2791
      %v2814 = vadd.f32 %v2718, %v2792
      %v2815 = vadd.f32 %v2719, %v2780
      %v2816 = vadd.f32 %v2720, %v2793
      %v2817 = vadd.f32 %v2721, %v2794
      %v2818 = vadd.f32 %v2722, %v2786
      %2820 = vset.pattern.permute.xlu0 0
      %2821 = vperm.xlu0 %2820, %v227
      %v2822 = vpop.permute.xlu0 %2821
      %2825 = vset.pattern.permute.xlu0 0
      %2826 = vperm.xlu0 %2825, %v228
      %v2827 = vpop.permute.xlu0 %2826
      %2830 = vset.pattern.permute.xlu0 0
      %2831 = vperm.xlu0 %2830, %v229
      %v2832 = vpop.permute.xlu0 %2831
      %2835 = vset.pattern.permute.xlu0 0
      %2836 = vperm.xlu0 %2835, %v230
      %v2837 = vpop.permute.xlu0 %2836
      %v2839 = vadd.f32 %v2807, %v2822
      %v2840 = vadd.f32 %v2808, %v2822
      %v2841 = vadd.f32 %v2809, %v2822
      %v2842 = vadd.f32 %v2810, %v2827
      %v2843 = vadd.f32 %v2811, %v2827
      %v2844 = vadd.f32 %v2812, %v2827
      %v2845 = vadd.f32 %v2813, %v2832
      %v2846 = vadd.f32 %v2814, %v2832
      %v2847 = vadd.f32 %v2815, %v2832
      %v2848 = vadd.f32 %v2816, %v2837
      %v2849 = vadd.f32 %v2817, %v2837
      %v2850 = vadd.f32 %v2818, %v2837
      %v2851 = vmax.f32 %v2839, 0.0
      %v2852 = vmax.f32 %v2840, 0.0
      %v2853 = vmax.f32 %v2841, 0.0
      %v2854 = vmax.f32 %v2842, 0.0
      %v2855 = vmax.f32 %v2843, 0.0
      %v2856 = vmax.f32 %v2844, 0.0
      %v2857 = vmax.f32 %v2845, 0.0
      %v2858 = vmax.f32 %v2846, 0.0
      %v2859 = vmax.f32 %v2847, 0.0
      %v2860 = vmax.f32 %v2848, 0.0
      %v2861 = vmax.f32 %v2849, 0.0
      %v2862 = vmax.f32 %v2850, 0.0
      %v2863 = vmul.f32 %v2851, %v289
      %v2864 = vmul.f32 %v2852, %v290
      %v2865 = vmul.f32 %v2853, %v291
      %v2866 = vmul.f32 %v2854, %v289
      %v2867 = vmul.f32 %v2855, %v290
      %v2868 = vmul.f32 %v2856, %v291
      %v2869 = vmul.f32 %v2857, %v289
      %v2870 = vmul.f32 %v2858, %v290
      %v2871 = vmul.f32 %v2859, %v291
      %v2872 = vmul.f32 %v2860, %v289
      %v2873 = vmul.f32 %v2861, %v290
      %v2874 = vmul.f32 %v2862, %v291
      %v2875 = vadd.f32 %v2863, %v2864
      %vm2876 = vcmask 261120
      %v2877 = vsel %vm2876, %v2865, 0.0
      %v2878 = vadd.f32 %v2875, %v2877
      %2879 = vadd.xlane.f32.xlu0 %v2878
      %v2880 = vpop.xlane.xlu0 %2879
      %v2881 = vadd.f32 %v2866, %v2867
      %v2882 = vsel %vm2876, %v2868, 0.0
      %v2883 = vadd.f32 %v2881, %v2882
      %2884 = vadd.xlane.f32.xlu0 %v2883
      %v2885 = vpop.xlane.xlu0 %2884
      %v2886 = vadd.f32 %v2869, %v2870
      %v2887 = vsel %vm2876, %v2871, 0.0
      %v2888 = vadd.f32 %v2886, %v2887
      %2889 = vadd.xlane.f32.xlu0 %v2888
      %v2890 = vpop.xlane.xlu0 %2889
      %v2891 = vadd.f32 %v2872, %v2873
      %v2892 = vsel %vm2876, %v2874, 0.0
      %v2893 = vadd.f32 %v2891, %v2892
      %2894 = vadd.xlane.f32.xlu0 %v2893
      %v2895 = vpop.xlane.xlu0 %2894
      %v2896 = vadd.f32 %v2880, 0.0
      %v2897 = vadd.f32 %v2885, 0.0
      %v2898 = vadd.f32 %v2890, 0.0
      %v2899 = vadd.f32 %v2895, 0.0
      %v2900 = vmul.f32 %v2896, 0.00390625
      %v2901 = vmul.f32 %v2897, 0.00390625
      %v2902 = vmul.f32 %v2898, 0.00390625
      %v2903 = vmul.f32 %v2899, 0.00390625
      %v2904 = vld [vmem:[%s3] sm:$0xff]
      %v2905 = vld [vmem:[%s3 + $0x8] sm:$0xff]
      %v2906 = vld [vmem:[%s3 + $0x10] sm:$0xff]
      %v2907 = vld [vmem:[%s3 + $0x18] sm:$0xff]
      %v2908 = vmul.f32 %v2900, %v2904
      %v2909 = vmul.f32 %v2901, %v2905
      %v2910 = vmul.f32 %v2902, %v2906
      %v2911 = vmul.f32 %v2903, %v2907
      %vm2912 = vcmask 7168
      %v2913 = vsel %vm2912, %v2908, 0.0
      %v2914 = vsel %vm2912, %v2909, 0.0
      %v2915 = vadd.f32 %v2913, %v2914
      %v2916 = vsel %vm2912, %v2910, 0.0
      %v2917 = vadd.f32 %v2915, %v2916
      %v2918 = vsel %vm2912, %v2911, 0.0
      %v2919 = vadd.f32 %v2917, %v2918
      %v2920 = vrot.slane %v2919, 4
      %v2921 = vadd.f32 %v2919, %v2920
      %v2922 = vrot.slane %v2921, 2
      %v2923 = vadd.f32 %v2921, %v2922
      %v2924 = vrot.slane %v2923, 1
      %v2925 = vadd.f32 %v2923, %v2924
      %v2926 = vld [vmem:[#allocation2] sm:$0x1]
      %v2927 = vadd.f32 %v2925, %v2926
      %vm2928 = vcmask 0
      %2929 = vst.msk [vmem:[%s222] sm:$0x1] %vm2928, %v2927
      %p2930 = scmp.lt.s32.totalorder %s18, 1
      %s2931 = scalar_select %p2930, %s18, 1
      %s2932 = scalar_lea.vmem %s5, %s2931
      // Predicated region
      $region41: #{isic_forward.1} parent=39 // pred_check
        %p2933 = pneg %p146
      $region42: #{isic_forward.1} parent=39 // pred_check_branch
        %2935 = sbr.rel (%p2933) target = $region44
      $region43: #{isic_forward.1} parent=39 // pred_region
        _
      $region44: #{isic_forward.1} parent=39 // pred_fallthru
        _
    $region40: #{isic_forward.1} parent=5 // pred_fallthru
      _
    %p2936 = scmp.le.s32.totalorder 2, %s13
    // Predicated region
    $region45: #{isic_forward.1} parent=5 // pred_check
      %p2937 = pneg %p2936
    $region46: #{isic_forward.1} parent=5 // pred_check_branch
      %2939 = sbr.rel (%p2937) target = $region48
    $region47: #{isic_forward.1} parent=5 // pred_region
      %s2940 = ssub.s32 %s13, 2
      // Predicated region
      $region49: #{isic_forward.1} parent=47 // pred_check
        %p2941 = pneg %p152
      $region50: #{isic_forward.1} parent=47 // pred_check_branch
        %2943 = sbr.rel (%p2941) target = $region52
      $region51: #{isic_forward.1} parent=47 // pred_region
        %p2944 = scmp.lt.s32.totalorder %s19, 1
        %s2945 = scalar_select %p2944, %s19, 1
        %s2946 = scalar_lea.vmem %s5, %s2945
      $region52: #{isic_forward.1} parent=47 // pred_fallthru
        _
    $region48: #{isic_forward.1} parent=5 // pred_fallthru
      _
  $region6: #{isic_forward.1} parent=0 // loop_footer
    %s17 = sadd.s32 1, %s13
  $region7: #{isic_forward.1} parent=0 // loop_footer_branch
    %12 = sbr.rel target = $region3
  $region8: #{isic_forward.1} parent=0 // loop_exit
    _

</llo_original>
